<compile_context>
chip_gen: v7x
topology: tpu7x:2x2x1
jax: 0.10.0
libtpu: 0.0.40
codegen_flags: <defaults>
</compile_context>

<pallas_src>
import functools

import jax
import jax.numpy as jnp
from jax.experimental import pallas as pl
from jax.experimental.pallas import tpu as pltpu


# ----------------------------- Pallas kernels ------------------------------ #

def _gram_kernel(z_ref, g_ref, *, frames):
    """Fused Gram matrices [X^T X | X^T Y] in ONE TN matmul.

    z_ref : (B*T, K) f32  -- row i = (batch i // T, frame i % T)
    g_ref : (K, 2K)  f32
    """
    z = z_ref[...]                                   # (BT, K)
    BT, K = z.shape

    # Frame position of every row (2-D iota; 1-D iota is not supported on TPU).
    t_idx = jax.lax.broadcasted_iota(jnp.int32, (BT, K), 0) % frames

    # Rows with t == T-1 belong only to Y: zero them on the LHS so the single
    # contraction over all BT rows reproduces the per-batch X^T sums exactly.
    x_row_mask = (t_idx != frames - 1).astype(z.dtype)
    zx = z * x_row_mask                              # masked X rows (LHS)

    # z_next[i] = z[(i+1) % BT]  (sublane rotate on the XLU; the wrapped rows
    # are killed by the LHS mask, so they never contribute).
    z_next = pltpu.roll(z, shift=BT - 1, axis=0)

    # Lane-fused RHS: [ Z | Z_next ]  -> single 2K-lane-wide output block.
    rhs = jnp.concatenate([z, z_next], axis=-1)      # (BT, 2K)

    # Contract over rows (dim 0 of both operands): X^T [X | Y] with no
    # explicit transpose materialized.
    g_ref[...] = jax.lax.dot_general(
        zx, rhs,
        dimension_numbers=(((0,), (0,)), ((), ())),
        preferred_element_type=jnp.float32)


def _apply_kernel(z_ref, ct_ref, z2_ref, *, frames):
    """Koopman rollout for all batches in ONE (B*T, K) @ (K, K) matmul.

    z_ref  : (B*T, K) f32
    ct_ref : (K, K)   f32
    z2_ref : (B*T, K) f32  -- row i: Zr[b, 0] if t == 0 else Zr[b, t-1] @ Ct
    """
    z = z_ref[...]                                   # (BT, K)
    BT, K = z.shape

    # Single dense rollout matmul (Ct shared across batches).  f32 is fine at
    # this size; cast to bf16 (f32 accumulate) only for large K on v6e/v7x.
    w = jnp.dot(z, ct_ref[...], preferred_element_type=jnp.float32)

    # w_prev[i] = w[(i-1) % BT]; every sequence's first row is replaced below,
    # so the wrap-around row never leaks into the output.
    w_prev = pltpu.roll(w, shift=1, axis=0)

    t_idx = jax.lax.broadcasted_iota(jnp.int32, (BT, K), 0) % frames
    # One full-width dense store (no concat temporary, no partial rows).
    z2_ref[...] = jnp.where(t_idx == 0, z, w_prev).astype(z2_ref.dtype)


# ------------------------------ pallas_call glue ---------------------------- #

_VMEM_SPEC = pl.BlockSpec(memory_space=pltpu.MemorySpace.VMEM)


def _gram(z_flat, frames):
    _, K = z_flat.shape
    return pl.pallas_call(
        functools.partial(_gram_kernel, frames=frames),
        out_shape=jax.ShapeDtypeStruct((K, 2 * K), jnp.float32),
        in_specs=[_VMEM_SPEC],
        out_specs=_VMEM_SPEC,
    )(z_flat)


def _apply(z_flat, ct, frames):
    BT, K = z_flat.shape
    return pl.pallas_call(
        functools.partial(_apply_kernel, frames=frames),
        out_shape=jax.ShapeDtypeStruct((BT, K), jnp.float32),
        in_specs=[_VMEM_SPEC, _VMEM_SPEC],
        out_specs=_VMEM_SPEC,
    )(z_flat, ct)


# ------------------------------- forward core -------------------------------- #

def _koopman_forward(Z, frames, k_dim):
    # torch does Z.squeeze().reshape(-1, frames, k_dim); the reshape makes the
    # squeeze immaterial, so flatten directly (trailing singleton collapses).
    z_flat = Z.astype(jnp.float32).reshape(-1, k_dim)        # (B*T, K)

    # Pallas: fused Gram matrices for the least-squares fit.
    G = _gram(z_flat, frames)                                # (K, 2K)
    XtX, XtY = G[:, :k_dim], G[:, k_dim:]

    # TODO(synk): torch.linalg.lstsq's QR solve has no Pallas equivalent; solve
    # the (K x K) normal equations with the XLA dense solver (glue path).
    Ct = jnp.linalg.solve(XtX, XtY)                          # (K, K)

    # Pallas: Y2 = X @ Ct and Z2 assembly, one dense block.
    Z2_flat = _apply(z_flat, Ct, frames)                     # (B*T, K)

    singular = jnp.any(jnp.isnan(Z2_flat))                   # device scalar
    return Z2_flat.reshape(Z.shape), Ct, singular


_koopman_forward_jit = jax.jit(_koopman_forward, static_argnums=(1, 2))


# ------------------------------- Module wrapper ----------------------------- #

class KoopmanLayerPallas:
    """JAX/Pallas port of KoopmanLayer.forward (loss() not part of forward)."""

    def __init__(self, frames: int, k_dim: int):
        self.frames = frames
        self.k_dim = k_dim
        self._is_matrix_singular = False

    @property
    def is_matrix_singular(self):
        return self._is_matrix_singular

    @is_matrix_singular.setter
    def is_matrix_singular(self, value):
        self._is_matrix_singular = value

    def forward(self, Z):
        # Jit-compatible hot path; the singular flag comes back as a device
        # array.  One lazy host check kept only for torch API parity (the
        # original returns (None, None) when the fit is singular).
        Z2, Ct, singular = _koopman_forward_jit(Z, self.frames, self.k_dim)
        if bool(singular):
            self._is_matrix_singular = True
            return None, None
        return Z2, Ct

    __call__ = forward


# ----------------------------------- main ----------------------------------- #

if __name__ == "__main__":
    B, frames, k_dim = 4, 16, 32       # B*(frames-1) = 60 rows >= k_dim (full rank)
    key = jax.random.PRNGKey(0)
    Z = jax.random.normal(key, (B, frames, k_dim, 1), dtype=jnp.float32)

    layer = KoopmanLayerPallas(frames=frames, k_dim=k_dim)
    Z2, Ct = layer.forward(Z)
    Z2 = jax.block_until_ready(Z2)
    Ct = jax.block_until_ready(Ct)

    # Pure-JAX reference of the torch semantics (lstsq-based).
    Zr = Z.reshape(-1, frames, k_dim)
    Xr, Yr = Zr[:, :-1], Zr[:, 1:]
    Ct_ref = jnp.linalg.lstsq(Xr.reshape(-1, k_dim), Yr.reshape(-1, k_dim))[0]
    Y2_ref = Xr @ Ct_ref
    Z2_ref = jnp.concatenate([Xr[:, :1], Y2_ref], axis=1).reshape(Z.shape)

    assert Z2.shape == Z.shape and Ct.shape == (k_dim, k_dim)
    assert jnp.allclose(Ct, Ct_ref, rtol=2e-3, atol=2e-3)
    assert jnp.allclose(Z2, Z2_ref, rtol=2e-3, atol=2e-3)

    print("KERNEL_OK")
</pallas_src>

<mosaic_0001>
module attributes {stable_mosaic.version = 11 : i64} {
  func.func @_gram_kernel(%arg0: memref<64x32xf32, #tpu.memory_space<vmem>>, %arg1: memref<32x64xf32, #tpu.memory_space<vmem>>) attributes {dimension_semantics = [], scalar_prefetch = 0 : i64, scratch_operands = 0 : i64, tpu.core_type = #tpu.core_type<tc>} {
    %c0 = arith.constant 0 : index
    %c0_0 = arith.constant 0 : index
    %0 = vector.load %arg0[%c0, %c0_0] : memref<64x32xf32, #tpu.memory_space<vmem>>, vector<64x32xf32>
    %1 = tpu.iota {dimensions = array<i32: 0>} : vector<64x32xi32>
    %c16_i32 = arith.constant 16 : i32
    %c0_i32 = arith.constant 0 : i32
    %2 = arith.cmpi eq, %c16_i32, %c0_i32 : i32
    %c1_i32 = arith.constant 1 : i32
    %3 = arith.select %2, %c1_i32, %c16_i32 : i32
    %4 = vector.broadcast %3 : i32 to vector<64x32xi32>
    %5 = arith.remsi %1, %4 : vector<64x32xi32>
    %c0_i32_1 = arith.constant 0 : i32
    %6 = vector.broadcast %c0_i32_1 : i32 to vector<64x32xi32>
    %7 = arith.cmpi ne, %5, %6 : vector<64x32xi32>
    %c0_i32_2 = arith.constant 0 : i32
    %8 = vector.broadcast %c0_i32_2 : i32 to vector<64x32xi32>
    %9 = arith.cmpi slt, %5, %8 : vector<64x32xi32>
    %c0_i32_3 = arith.constant 0 : i32
    %10 = arith.cmpi slt, %3, %c0_i32_3 : i32
    %11 = vector.broadcast %10 : i1 to vector<64x32xi1>
    %12 = vector.broadcast %11 : vector<64x32xi1> to vector<64x32xi1>
    %13 = arith.xori %9, %12 : vector<64x32xi1>
    %14 = arith.andi %13, %7 : vector<64x32xi1>
    %15 = vector.broadcast %3 : i32 to vector<64x32xi32>
    %16 = arith.addi %5, %15 : vector<64x32xi32>
    %17 = arith.select %14, %16, %5 : vector<64x32xi1>, vector<64x32xi32>
    %c15_i32 = arith.constant 15 : i32
    %18 = vector.broadcast %c15_i32 : i32 to vector<64x32xi32>
    %19 = arith.cmpi ne, %17, %18 : vector<64x32xi32>
    %20 = arith.extui %19 : vector<64x32xi1> to vector<64x32xi32>
    %21 = arith.sitofp %20 : vector<64x32xi32> to vector<64x32xf32>
    %22 = arith.mulf %0, %21 : vector<64x32xf32>
    %c63_i32 = arith.constant 63 : i32
    %23 = tpu.dynamic_rotate %0 by %c63_i32 dim 0 : vector<64x32xf32>, i32 -> vector<64x32xf32>
    %24 = tpu.concatenate %0, %23 in 1 : vector<64x32xf32>, vector<64x32xf32> -> vector<64x64xf32>
    %cst = arith.constant dense<0.000000e+00> : vector<32x64xf32>
    %25 = tpu.matmul %22, %24, %cst {dimension_numbers = #tpu.dot_dimension_numbers<[0], [0], [1], [1], [0, 1, 1, 1], [], []>} : vector<64x32xf32>, vector<64x64xf32>, vector<32x64xf32> -> vector<32x64xf32>
    %c0_4 = arith.constant 0 : index
    %c0_5 = arith.constant 0 : index
    %26 = vector.load %arg1[%c0_4, %c0_5] : memref<32x64xf32, #tpu.memory_space<vmem>>, vector<32x64xf32>
    tpu.vector_store %arg1[%c0_4, %c0_5], %25 {strides = array<i32>} : memref<32x64xf32, #tpu.memory_space<vmem>>, vector<32x64xf32>,
    return
  }
}

module attributes {stable_mosaic.version = 11 : i64} {
  func.func @_apply_kernel(%arg0: memref<64x32xf32, #tpu.memory_space<vmem>>, %arg1: memref<32x32xf32, #tpu.memory_space<vmem>>, %arg2: memref<64x32xf32, #tpu.memory_space<vmem>>) attributes {dimension_semantics = [], scalar_prefetch = 0 : i64, scratch_operands = 0 : i64, tpu.core_type = #tpu.core_type<tc>} {
    %c0 = arith.constant 0 : index
    %c0_0 = arith.constant 0 : index
    %0 = vector.load %arg0[%c0, %c0_0] : memref<64x32xf32, #tpu.memory_space<vmem>>, vector<64x32xf32>
    %c0_1 = arith.constant 0 : index
    %c0_2 = arith.constant 0 : index
    %1 = vector.load %arg1[%c0_1, %c0_2] : memref<32x32xf32, #tpu.memory_space<vmem>>, vector<32x32xf32>
    %cst = arith.constant dense<0.000000e+00> : vector<64x32xf32>
    %2 = tpu.matmul %0, %1, %cst {dimension_numbers = #tpu.dot_dimension_numbers<[1], [0], [0], [1], [0, 0, 1, 1], [], []>} : vector<64x32xf32>, vector<32x32xf32>, vector<64x32xf32> -> vector<64x32xf32>
    %c1_i32 = arith.constant 1 : i32
    %3 = tpu.dynamic_rotate %2 by %c1_i32 dim 0 : vector<64x32xf32>, i32 -> vector<64x32xf32>
    %4 = tpu.iota {dimensions = array<i32: 0>} : vector<64x32xi32>
    %c16_i32 = arith.constant 16 : i32
    %c0_i32 = arith.constant 0 : i32
    %5 = arith.cmpi eq, %c16_i32, %c0_i32 : i32
    %c1_i32_3 = arith.constant 1 : i32
    %6 = arith.select %5, %c1_i32_3, %c16_i32 : i32
    %7 = vector.broadcast %6 : i32 to vector<64x32xi32>
    %8 = arith.remsi %4, %7 : vector<64x32xi32>
    %c0_i32_4 = arith.constant 0 : i32
    %9 = vector.broadcast %c0_i32_4 : i32 to vector<64x32xi32>
    %10 = arith.cmpi ne, %8, %9 : vector<64x32xi32>
    %c0_i32_5 = arith.constant 0 : i32
    %11 = vector.broadcast %c0_i32_5 : i32 to vector<64x32xi32>
    %12 = arith.cmpi slt, %8, %11 : vector<64x32xi32>
    %c0_i32_6 = arith.constant 0 : i32
    %13 = arith.cmpi slt, %6, %c0_i32_6 : i32
    %14 = vector.broadcast %13 : i1 to vector<64x32xi1>
    %15 = vector.broadcast %14 : vector<64x32xi1> to vector<64x32xi1>
    %16 = arith.xori %12, %15 : vector<64x32xi1>
    %17 = arith.andi %16, %10 : vector<64x32xi1>
    %18 = vector.broadcast %6 : i32 to vector<64x32xi32>
    %19 = arith.addi %8, %18 : vector<64x32xi32>
    %20 = arith.select %17, %19, %8 : vector<64x32xi1>, vector<64x32xi32>
    %c0_i32_7 = arith.constant 0 : i32
    %21 = vector.broadcast %c0_i32_7 : i32 to vector<64x32xi32>
    %22 = arith.cmpi eq, %20, %21 : vector<64x32xi32>
    %23 = arith.select %22, %0, %3 : vector<64x32xi1>, vector<64x32xf32>
    %c0_8 = arith.constant 0 : index
    %c0_9 = arith.constant 0 : index
    %24 = vector.load %arg2[%c0_8, %c0_9] : memref<64x32xf32, #tpu.memory_space<vmem>>, vector<64x32xf32>
    tpu.vector_store %arg2[%c0_8, %c0_9], %23 {strides = array<i32>} : memref<64x32xf32, #tpu.memory_space<vmem>>, vector<64x32xf32>,
    return
  }
}

</mosaic_0001>

<llo_original>
// kernel: custom-call.8
$region0: #{custom-call.8}
  %s0 = inlined_call_operand.vmem [shape: f32[32,32], index: 0, kind: input, shape index: {}]
  %s1 = inlined_call_operand.vmem [shape: f32[32,32], index: 1, kind: output, shape index: {0}]
  %s2 = inlined_call_operand.hbm [shape: s32[32], index: 2, kind: output, shape index: {1}]
  %s3 = inlined_call_operand.vmem [shape: s32[32], index: 3, kind: output, shape index: {2}]
  %4 = xla_tuple %s1, %s2, %s3
  $region1: #{custom-call.8} parent=0
    #allocation0 [shape = 'u8[16384]{0}', space=vmem, size = 0x4000, scoped, tag = 'operand span for operand 0']
    #allocation1 [shape = 'u8[16384]{0}', space=vmem, size = 0x4000, scoped, tag = 'operand span for operand 1']
    #allocation2 [shape = 'u8[4096]{0}', space=vmem, size = 0x1000, scoped, tag = 'operand span for operand 2']
    #allocation3 [shape = 'u8[512]{0}', space=vmem, size = 0x400, scoped, tag = 'packed  for operand 2']
    #allocation4 [shape = 's32[1]{0}', space=sflag, size = 0x4, scoped, tag = 'scoped memory for custom-call.8']
    #allocation5 [shape = 'u8[4096]{0}', space=vmem, size = 0x1000, scoped, tag = 'operand span for operand 3']
    #allocation6 [shape = 'u8[512]{0}', space=vmem, size = 0x400, scoped, tag = 'packed  for operand 3']
    #allocation7 [shape = 's32[32,128]{1,0}', space=vmem, size = 0x4000, scoped, tag = 'scratch for permutations']
    %5 = vsyncpa [#allocation4], 0
    %p7 = scmp.gt.s32.totalorder 32, 0
    // Predicated region
    $region2: #{custom-call.8} parent=1 // pred_check
      %p8 = pneg %p7
    $region3: #{custom-call.8} parent=1 // pred_check_branch
      %10 = sbr.rel (%p8) target = $region5
    $region4: #{custom-call.8} parent=1 // pred_region
      %s11 = sshra.s32 32, 3
      %p12 = scmp.gt.s32.totalorder %s11, 0
      // Predicated region
      $region6: #{custom-call.8} parent=4 // pred_check
        %p13 = pneg %p12
      $region7: #{custom-call.8} parent=4 // pred_check_branch
        %15 = sbr.rel (%p13) target = $region9
      $region8: #{custom-call.8} parent=4 // pred_region
        %s16 = ssub.s32 %s11, 1
        %s17 = smul.u32 %s16, 128
        %s18 = sshra.s32 %s17, 4
        %s19 = scalar_lea.vmem %s0, %s18
        %v20 = vld [vmem:[%s0] sm:$0xff]
        // While loop
        $region10: #{custom-call.8} parent=8 // loop_pre_header
          _
        $region11: #{custom-call.8} parent=8 // loop_header
          %s21 = sphi %s0, %s43
          %s22 = sphi [#allocation0], %s44
          %v23 = vphi %v20, %v45
          %s24 = ssub.s32 %s19, 64
          %p25 = scmp.gt.s32.totalorder %s21, %s24
        $region12: #{custom-call.8} parent=8 // loop_header_branch
          %27 = sbr.rel (%p25) target = $region16
        $region13: #{custom-call.8} parent=8 // loop_body
          %28 = vst [vmem:[%s22] sm:$0xff] %v23
          %v29 = vld [vmem:[%s21 + $0x8] sm:$0xff]
          %30 = vst [vmem:[%s22 + $0x8] sm:$0xff] %v29
          %v31 = vld [vmem:[%s21 + $0x10] sm:$0xff]
          %32 = vst [vmem:[%s22 + $0x10] sm:$0xff] %v31
          %v33 = vld [vmem:[%s21 + $0x18] sm:$0xff]
          %34 = vst [vmem:[%s22 + $0x18] sm:$0xff] %v33
          %v35 = vld [vmem:[%s21 + $0x20] sm:$0xff]
          %36 = vst [vmem:[%s22 + $0x20] sm:$0xff] %v35
          %v37 = vld [vmem:[%s21 + $0x28] sm:$0xff]
          %38 = vst [vmem:[%s22 + $0x28] sm:$0xff] %v37
          %v39 = vld [vmem:[%s21 + $0x30] sm:$0xff]
          %40 = vst [vmem:[%s22 + $0x30] sm:$0xff] %v39
          %v41 = vld [vmem:[%s21 + $0x38] sm:$0xff]
          %42 = vst [vmem:[%s22 + $0x38] sm:$0xff] %v41
        $region14: #{custom-call.8} parent=8 // loop_footer
          %s43 = scalar_lea.vmem %s21, 64
          %s44 = scalar_lea.vmem %s22, 64
          %v45 = vld [vmem:[%s21 + $0x40] sm:$0xff]
        $region15: #{custom-call.8} parent=8 // loop_footer_branch
          %46 = sbr.rel target = $region11
        $region16: #{custom-call.8} parent=8 // loop_exit
          _
        // While loop
        $region17: #{custom-call.8} parent=8 // loop_pre_header
          _
        $region18: #{custom-call.8} parent=8 // loop_header
          %s47 = sphi %s21, %s55
          %s48 = sphi %s22, %s56
          %v49 = vphi %v23, %v49
          %p50 = scmp.gt.s32.totalorder %s47, %s19
        $region19: #{custom-call.8} parent=8 // loop_header_branch
          %52 = sbr.rel (%p50) target = $region23
        $region20: #{custom-call.8} parent=8 // loop_body
          %v53 = vld [vmem:[%s47] sm:$0xff]
          %54 = vst [vmem:[%s48] sm:$0xff] %v53
        $region21: #{custom-call.8} parent=8 // loop_footer
          %s55 = scalar_lea.vmem %s47, 8
          %s56 = scalar_lea.vmem %s48, 8
        $region22: #{custom-call.8} parent=8 // loop_footer_branch
          %57 = sbr.rel target = $region18
        $region23: #{custom-call.8} parent=8 // loop_exit
          _
      $region9: #{custom-call.8} parent=4 // pred_fallthru
        _
      %s58 = sand.u32 32, 7
      %s59 = sshllo.u32 0, %s58
      %s60 = smul.u32 %s11, 128
      %s61 = sshra.s32 %s60, 4
      %s62 = scalar_lea.vmem [#allocation0], %s61
      %s63 = smul.u32 %s11, 128
      %s64 = sshra.s32 %s63, 4
      %s65 = scalar_lea.vmem %s0, %s64
      %v66 = vld [vmem:[%s65] sm:%s59]
      %67 = vst [vmem:[%s62] sm:%s59] %v66
    $region5: #{custom-call.8} parent=1 // pred_fallthru
      _
    %v68 = vld [vmem:[#allocation0] sm:$0xff]
    %69 = vst [vmem:[#allocation1] sm:$0xff] %v68
    %s70 = scalar_lea.vmem [#allocation1], 8
    %s71 = scalar_lea.vmem [#allocation0], 8
    %v72 = vld [vmem:[%s71] sm:$0xff]
    %73 = vst [vmem:[%s70] sm:$0xff] %v72
    %s74 = scalar_lea.vmem [#allocation1], 16
    %s75 = scalar_lea.vmem [#allocation0], 16
    %v76 = vld [vmem:[%s75] sm:$0xff]
    %77 = vst [vmem:[%s74] sm:$0xff] %v76
    %s78 = scalar_lea.vmem [#allocation1], 24
    %s79 = scalar_lea.vmem [#allocation0], 24
    %v80 = vld [vmem:[%s79] sm:$0xff]
    %81 = vst [vmem:[%s78] sm:$0xff] %v80
    %82 = vst [vmem:[#allocation2] sm:$0x1] 0
    %v83 = vlaneseq
    %v84 = vshrl.u32 %v83, 7
    %v85 = vmov %v84
    loop: start=0, step=1, limit=4
    $region24: #{custom-call.8} parent=1 // loop_pre_header
      _
    $region25: #{custom-call.8} parent=1 // loop_header
      %s87 = sphi 0, %s91
      %p88 = scmp.ge.s32.totalorder %s87, 4
    $region26: #{custom-call.8} parent=1 // loop_header_branch
      %90 = sbr.rel (%p88) target = $region30
    $region27: #{custom-call.8} parent=1 // loop_body
      %s92 = smul.addr %s87, 8
      %s93 = scalar_lea.vmem [#allocation7], %s92
      %s94 = smul.u32 %s87, 8
      %v95 = vstv %s94
      %v96 = vadd.s32 %v85, %v95
      %97 = vst [vmem:[%s93] sm:$0xff] %v96
    $region28: #{custom-call.8} parent=1 // loop_footer
      %s91 = sadd.s32 1, %s87
    $region29: #{custom-call.8} parent=1 // loop_footer_branch
      %86 = sbr.rel target = $region25
    $region30: #{custom-call.8} parent=1 // loop_exit
      _
    loop: start=0, step=1, limit=32
    $region31: #{custom-call.8} parent=1 // loop_pre_header
      _
    $region32: #{custom-call.8} parent=1 // loop_header
      %s99 = sphi 0, %s103
      %p100 = scmp.ge.s32.totalorder %s99, 32
    $region33: #{custom-call.8} parent=1 // loop_header_branch
      %102 = sbr.rel (%p100) target = $region37
    $region34: #{custom-call.8} parent=1 // loop_body
      %v104 = vstv %s99
      %v105 = vlaneseq
      %v106 = vshrl.u32 %v105, 7
      %v107 = vmov %v106
      %v108 = vld [vmem:[#allocation1] sm:$0xff]
      %v109 = vand.u32 2147483647, %v108
      %v111 = vstv %s99
      %vm112 = vcmp.ge.s32.totalorder %v107, %v111
      %vm113 = vcmp.lt.s32.totalorder %v107, 32
      %vm114 = vmand %vm112, %vm113
      %vm115 = vcmp.lt.f32.partialorder -inf, %v109
      %vm116 = vmand %vm114, %vm115
      %v117 = vsel %vm116, %v107, %v104
      %v118 = vsel %vm116, %v109, -inf
      %s119 = scalar_lea.vmem [#allocation1], 8
      %v120 = vld [vmem:[%s119] sm:$0xff]
      %v121 = vand.u32 2147483647, %v120
      %v122 = vadd.s32 %v107, 8
      %v123 = vstv %s99
      %vm124 = vcmp.ge.s32.totalorder %v122, %v123
      %vm125 = vcmp.lt.s32.totalorder %v122, 32
      %vm126 = vmand %vm124, %vm125
      %vm127 = vcmp.lt.f32.partialorder %v118, %v121
      %vm128 = vmand %vm126, %vm127
      %v129 = vsel %vm128, %v122, %v117
      %v130 = vsel %vm128, %v121, %v118
      %s131 = scalar_lea.vmem [#allocation1], 16
      %v132 = vld [vmem:[%s131] sm:$0xff]
      %v133 = vand.u32 2147483647, %v132
      %v134 = vadd.s32 %v107, 16
      %v135 = vstv %s99
      %vm136 = vcmp.ge.s32.totalorder %v134, %v135
      %vm137 = vcmp.lt.s32.totalorder %v134, 32
      %vm138 = vmand %vm136, %vm137
      %vm139 = vcmp.lt.f32.partialorder %v130, %v133
      %vm140 = vmand %vm138, %vm139
      %v141 = vsel %vm140, %v134, %v129
      %v142 = vsel %vm140, %v133, %v130
      %s143 = scalar_lea.vmem [#allocation1], 24
      %v144 = vld [vmem:[%s143] sm:$0xff]
      %v145 = vand.u32 2147483647, %v144
      %v146 = vadd.s32 %v107, 24
      %v147 = vstv %s99
      %vm148 = vcmp.ge.s32.totalorder %v146, %v147
      %vm149 = vcmp.lt.s32.totalorder %v146, 32
      %vm150 = vmand %vm148, %vm149
      %vm151 = vcmp.lt.f32.partialorder %v142, %v145
      %vm152 = vmand %vm150, %vm151
      %v153 = vsel %vm152, %v146, %v141
      %v154 = vsel %vm152, %v145, %v142
      %v155 = vrot.slane %v154, 1
      %v156 = vrot.slane %v153, 1
      %vm157 = vcmp.ge.f32.partialorder %v155, %v154
      %v158 = vsel %vm157, %v155, %v154
      %v159 = vsel %vm157, %v156, %v153
      %v160 = vrot.slane %v155, 1
      %v161 = vrot.slane %v156, 1
      %vm162 = vcmp.ge.f32.partialorder %v160, %v158
      %v163 = vsel %vm162, %v160, %v158
      %v164 = vsel %vm162, %v161, %v159
      %v165 = vrot.slane %v160, 1
      %v166 = vrot.slane %v161, 1
      %vm167 = vcmp.ge.f32.partialorder %v165, %v163
      %v168 = vsel %vm167, %v165, %v163
      %v169 = vsel %vm167, %v166, %v164
      %v170 = vrot.slane %v165, 1
      %v171 = vrot.slane %v166, 1
      %vm172 = vcmp.ge.f32.partialorder %v170, %v168
      %v173 = vsel %vm172, %v170, %v168
      %v174 = vsel %vm172, %v171, %v169
      %v175 = vrot.slane %v170, 1
      %v176 = vrot.slane %v171, 1
      %vm177 = vcmp.ge.f32.partialorder %v175, %v173
      %v178 = vsel %vm177, %v175, %v173
      %v179 = vsel %vm177, %v176, %v174
      %v180 = vrot.slane %v175, 1
      %v181 = vrot.slane %v176, 1
      %vm182 = vcmp.ge.f32.partialorder %v180, %v178
      %v183 = vsel %vm182, %v180, %v178
      %v184 = vsel %vm182, %v181, %v179
      %v185 = vrot.slane %v180, 1
      %v186 = vrot.slane %v181, 1
      %vm187 = vcmp.ge.f32.partialorder %v185, %v183
      %v188 = vsel %vm187, %v185, %v183
      %v189 = vsel %vm187, %v186, %v184
      %s190 = ssub.s32 128, %s99
      %191 = vrot.lane.b32.xlu0 %v189, %s190
      %v192 = vpop.permute.xlu0 %191
      %s193 = vtos %v192
      %v194 = vstv %s99
      %v195 = vlaneseq
      %v196 = vand.u32 %v195, 127
      %vm197 = vcmp.eq.s32.totalorder %v196, %v194
      %v198 = vstv %s193
      %v199 = vld [vmem:[#allocation2] ss:$0 sm:$0xff]
      %v200 = vsel %vm197, %v198, %v199
      %201 = vst [vmem:[#allocation2] sm:$0x1] %v200
      %s202 = scalar_lea.vmem [#allocation1], %s99
      %s203 = scalar_lea.vmem [#allocation1], %s193
      %v204 = vld [vmem:[%s202] ss:$0 sm:$0xff]
      %v205 = vld [vmem:[%s203] ss:$0 sm:$0xff]
      %206 = vst [vmem:[%s203] sm:$0x1] %v204
      %207 = vst [vmem:[%s202] sm:$0x1] %v205
      %s208 = scalar_lea.vmem [#allocation7], %s99
      %s209 = scalar_lea.vmem [#allocation7], %s193
      %v210 = vld [vmem:[%s208] ss:$0 sm:$0xff]
      %v211 = vld [vmem:[%s209] ss:$0 sm:$0xff]
      %212 = vst [vmem:[%s209] sm:$0x1] %v210
      %213 = vst [vmem:[%s208] sm:$0x1] %v211
      %vm214 = vcmp.ne.f32.partialorder %v205, 0.0
      %vm215 = vmand %vm197, %vm214
      %v216 = vsel %vm215, %v205, 1.0
      %v217 = vlaneseq
      %v218 = vand.u32 %v217, 127
      %v219 = vstv %s99
      %vm220 = vcmp.gt.s32.totalorder %v218, %v219
      %v221 = vsel %vm220, %v205, 0.0
      %v222 = vlaneseq
      %v223 = vshrl.u32 %v222, 7
      %v224 = vmov %v223
      %v225 = vld [vmem:[#allocation1] sm:$0xff]
      %v227 = vstv %s99
      %vm228 = vcmp.gt.s32.totalorder %v224, %v227
      %v229 = vsel %vm228, %v216, 1.0
      %v230 = vrcp.pop %v229
      %v231 = vmul.f32 %v225, %v230
      %vm232 = vmand %vm228, %vm197
      %v233 = vsel %vm232, %v231, 0.0
      %234 = vadd.xlane.f32.xlu0 %v233
      %v235 = vpop.xlane.xlu0 %234
      %v236 = vmul.f32 %v235, %v221
      %v237 = vsub.f32 %v231, %v236
      %238 = vst [vmem:[#allocation1] sm:$0xff] %v237
      %s239 = scalar_lea.vmem [#allocation1], 8
      %v240 = vld [vmem:[%s239] sm:$0xff]
      %v241 = vadd.s32 %v224, 8
      %v242 = vstv %s99
      %vm243 = vcmp.gt.s32.totalorder %v241, %v242
      %v244 = vsel %vm243, %v216, 1.0
      %v245 = vrcp.pop %v244
      %v246 = vmul.f32 %v240, %v245
      %vm247 = vmand %vm243, %vm197
      %v248 = vsel %vm247, %v246, 0.0
      %249 = vadd.xlane.f32.xlu0 %v248
      %v250 = vpop.xlane.xlu0 %249
      %v251 = vmul.f32 %v250, %v221
      %v252 = vsub.f32 %v246, %v251
      %253 = vst [vmem:[%s239] sm:$0xff] %v252
      %s254 = scalar_lea.vmem [#allocation1], 16
      %v255 = vld [vmem:[%s254] sm:$0xff]
      %v256 = vadd.s32 %v224, 16
      %v257 = vstv %s99
      %vm258 = vcmp.gt.s32.totalorder %v256, %v257
      %v259 = vsel %vm258, %v216, 1.0
      %v260 = vrcp.pop %v259
      %v261 = vmul.f32 %v255, %v260
      %vm262 = vmand %vm258, %vm197
      %v263 = vsel %vm262, %v261, 0.0
      %264 = vadd.xlane.f32.xlu0 %v263
      %v265 = vpop.xlane.xlu0 %264
      %v266 = vmul.f32 %v265, %v221
      %v267 = vsub.f32 %v261, %v266
      %268 = vst [vmem:[%s254] sm:$0xff] %v267
      %s269 = scalar_lea.vmem [#allocation1], 24
      %v270 = vld [vmem:[%s269] sm:$0xff]
      %v271 = vadd.s32 %v224, 24
      %v272 = vstv %s99
      %vm273 = vcmp.gt.s32.totalorder %v271, %v272
      %v274 = vsel %vm273, %v216, 1.0
      %v275 = vrcp.pop %v274
      %v276 = vmul.f32 %v270, %v275
      %vm277 = vmand %vm273, %vm197
      %v278 = vsel %vm277, %v276, 0.0
      %279 = vadd.xlane.f32.xlu0 %v278
      %v280 = vpop.xlane.xlu0 %279
      %v281 = vmul.f32 %v280, %v221
      %v282 = vsub.f32 %v276, %v281
      %283 = vst [vmem:[%s269] sm:$0xff] %v282
    $region35: #{custom-call.8} parent=1 // loop_footer
      %s103 = sadd.s32 1, %s99
    $region36: #{custom-call.8} parent=1 // loop_footer_branch
      %98 = sbr.rel target = $region32
    $region37: #{custom-call.8} parent=1 // loop_exit
      _
    %v284 = vld [vmem:[#allocation7] sm:$0xff]
    %s285 = scalar_lea.vmem [#allocation7], 8
    %v286 = vld [vmem:[%s285] sm:$0xff]
    %s287 = scalar_lea.vmem [#allocation7], 16
    %v288 = vld [vmem:[%s287] sm:$0xff]
    %s289 = scalar_lea.vmem [#allocation7], 24
    %v290 = vld [vmem:[%s289] sm:$0xff]
    %s291 = scalar_lea.vmem [#allocation7], 32
    %s292 = scalar_lea.vmem [#allocation7], 40
    %s293 = scalar_lea.vmem [#allocation7], 48
    %s294 = scalar_lea.vmem [#allocation7], 56
    %s295 = scalar_lea.vmem [#allocation7], 64
    %s296 = scalar_lea.vmem [#allocation7], 72
    %s297 = scalar_lea.vmem [#allocation7], 80
    %s298 = scalar_lea.vmem [#allocation7], 88
    %s299 = scalar_lea.vmem [#allocation7], 96
    %s300 = scalar_lea.vmem [#allocation7], 104
    %s301 = scalar_lea.vmem [#allocation7], 112
    %s302 = scalar_lea.vmem [#allocation7], 120
    %303 = vxpose.xlu0.b32.start [1/16] %v284, 128
    %304 = vxpose.xlu0.b32.cont [2/16] %v286, 128
    %305 = vxpose.xlu0.b32.cont [3/16] %v288, 128
    %306 = vxpose.xlu0.b32.cont [4/16] %v290, 128
    %307 = vxpose.xlu0.b32.cont [5/16] 0, 128
    %308 = vxpose.xlu0.b32.cont [6/16] 0, 128
    %309 = vxpose.xlu0.b32.cont [7/16] 0, 128
    %310 = vxpose.xlu0.b32.cont [8/16] 0, 128
    %311 = vxpose.xlu0.b32.cont [9/16] 0, 128
    %312 = vxpose.xlu0.b32.cont [10/16] 0, 128
    %313 = vxpose.xlu0.b32.cont [11/16] 0, 128
    %314 = vxpose.xlu0.b32.cont [12/16] 0, 128
    %315 = vxpose.xlu0.b32.cont [13/16] 0, 128
    %316 = vxpose.xlu0.b32.cont [14/16] 0, 128
    %317 = vxpose.xlu0.b32.cont [15/16] 0, 128
    %318 = vxpose.xlu0.b32.end [16/16] 0, 128
    %v319 = vpop.trf.xlu0
    %v320 = vpop.trf.xlu0
    %v321 = vpop.trf.xlu0
    %v322 = vpop.trf.xlu0
    %v323 = vpop.trf.xlu0
    %v324 = vpop.trf.xlu0
    %v325 = vpop.trf.xlu0
    %v326 = vpop.trf.xlu0
    %v327 = vpop.trf.xlu0
    %v328 = vpop.trf.xlu0
    %v329 = vpop.trf.xlu0
    %v330 = vpop.trf.xlu0
    %v331 = vpop.trf.xlu0
    %v332 = vpop.trf.xlu0
    %v333 = vpop.trf.xlu0
    %v334 = vpop.trf.xlu0
    %335 = vst [vmem:[#allocation5] sm:$0x1] %v319
    %s337 = sshllo.u32 0, 1
    %v339 = vld [vmem:[#allocation2] sm:%s337]
    %s340 = sshllo.u32 0, 1
    %341 = vst [vmem:[#allocation3] sm:%s340] %v339
    %s343 = sshllo.u32 0, 1
    %v345 = vld [vmem:[#allocation5] sm:%s343]
    %s346 = sshllo.u32 0, 1
    %347 = vst [vmem:[#allocation6] sm:%s346] %v345
    %p349 = scmp.gt.s32.totalorder 32, 0
    // Predicated region
    $region38: #{custom-call.8} parent=1 // pred_check
      %p350 = pneg %p349
    $region39: #{custom-call.8} parent=1 // pred_check_branch
      %352 = sbr.rel (%p350) target = $region41
    $region40: #{custom-call.8} parent=1 // pred_region
      %s353 = sshra.s32 32, 3
      %p354 = scmp.gt.s32.totalorder %s353, 0
      // Predicated region
      $region42: #{custom-call.8} parent=40 // pred_check
        %p355 = pneg %p354
      $region43: #{custom-call.8} parent=40 // pred_check_branch
        %357 = sbr.rel (%p355) target = $region45
      $region44: #{custom-call.8} parent=40 // pred_region
        %s358 = ssub.s32 %s353, 1
        %s359 = smul.u32 %s358, 128
        %s360 = sshra.s32 %s359, 4
        %s361 = scalar_lea.vmem [#allocation1], %s360
        %v362 = vld [vmem:[#allocation1] sm:$0xff]
        // While loop
        $region46: #{custom-call.8} parent=44 // loop_pre_header
          _
        $region47: #{custom-call.8} parent=44 // loop_header
          %s363 = sphi [#allocation1], %s385
          %s364 = sphi %s1, %s386
          %v365 = vphi %v362, %v387
          %s366 = ssub.s32 %s361, 64
          %p367 = scmp.gt.s32.totalorder %s363, %s366
        $region48: #{custom-call.8} parent=44 // loop_header_branch
          %369 = sbr.rel (%p367) target = $region52
        $region49: #{custom-call.8} parent=44 // loop_body
          %370 = vst [vmem:[%s364] sm:$0xff] %v365
          %v371 = vld [vmem:[%s363 + $0x8] sm:$0xff]
          %372 = vst [vmem:[%s364 + $0x8] sm:$0xff] %v371
          %v373 = vld [vmem:[%s363 + $0x10] sm:$0xff]
          %374 = vst [vmem:[%s364 + $0x10] sm:$0xff] %v373
          %v375 = vld [vmem:[%s363 + $0x18] sm:$0xff]
          %376 = vst [vmem:[%s364 + $0x18] sm:$0xff] %v375
          %v377 = vld [vmem:[%s363 + $0x20] sm:$0xff]
          %378 = vst [vmem:[%s364 + $0x20] sm:$0xff] %v377
          %v379 = vld [vmem:[%s363 + $0x28] sm:$0xff]
          %380 = vst [vmem:[%s364 + $0x28] sm:$0xff] %v379
          %v381 = vld [vmem:[%s363 + $0x30] sm:$0xff]
          %382 = vst [vmem:[%s364 + $0x30] sm:$0xff] %v381
          %v383 = vld [vmem:[%s363 + $0x38] sm:$0xff]
          %384 = vst [vmem:[%s364 + $0x38] sm:$0xff] %v383
        $region50: #{custom-call.8} parent=44 // loop_footer
          %s385 = scalar_lea.vmem %s363, 64
          %s386 = scalar_lea.vmem %s364, 64
          %v387 = vld [vmem:[%s363 + $0x40] sm:$0xff]
        $region51: #{custom-call.8} parent=44 // loop_footer_branch
          %388 = sbr.rel target = $region47
        $region52: #{custom-call.8} parent=44 // loop_exit
          _
        // While loop
        $region53: #{custom-call.8} parent=44 // loop_pre_header
          _
        $region54: #{custom-call.8} parent=44 // loop_header
          %s389 = sphi %s363, %s397
          %s390 = sphi %s364, %s398
          %v391 = vphi %v365, %v391
          %p392 = scmp.gt.s32.totalorder %s389, %s361
        $region55: #{custom-call.8} parent=44 // loop_header_branch
          %394 = sbr.rel (%p392) target = $region59
        $region56: #{custom-call.8} parent=44 // loop_body
          %v395 = vld [vmem:[%s389] sm:$0xff]
          %396 = vst [vmem:[%s390] sm:$0xff] %v395
        $region57: #{custom-call.8} parent=44 // loop_footer
          %s397 = scalar_lea.vmem %s389, 8
          %s398 = scalar_lea.vmem %s390, 8
        $region58: #{custom-call.8} parent=44 // loop_footer_branch
          %399 = sbr.rel target = $region54
        $region59: #{custom-call.8} parent=44 // loop_exit
          _
      $region45: #{custom-call.8} parent=40 // pred_fallthru
        _
      %s400 = sand.u32 32, 7
      %s401 = sshllo.u32 0, %s400
      %s402 = smul.u32 %s353, 128
      %s403 = sshra.s32 %s402, 4
      %s404 = scalar_lea.vmem %s1, %s403
      %s405 = smul.u32 %s353, 128
      %s406 = sshra.s32 %s405, 4
      %s407 = scalar_lea.vmem [#allocation1], %s406
      %v408 = vld [vmem:[%s407] sm:%s401]
      %409 = vst [vmem:[%s404] sm:%s401] %v408
    $region41: #{custom-call.8} parent=1 // pred_fallthru
      _
    // Predicated region
    $region60: #{custom-call.8} parent=1 // pred_check
      _
    $region61: #{custom-call.8} parent=1 // pred_check_branch
      %411 = sbr.rel (0) target = $region63
    $region62: #{custom-call.8} parent=1 // pred_region
      %s413 = ssub.s32 16, 16
      %414 = vsyncadd [#allocation4], %s413
      %s415 = sshll.u32 [#allocation3], 4
      %s416 = int_to_ptr.vmem [resolvable:$true] %s415
      %418 = dma.vmem_to_hbm [thread:$0]  %s416, 16, %s2, [#allocation4]
    $region63: #{custom-call.8} parent=1 // pred_fallthru
      _
    // Predicated region
    $region64: #{custom-call.8} parent=1 // pred_check
      _
    $region65: #{custom-call.8} parent=1 // pred_check_branch
      %420 = sbr.rel (0) target = $region67
    $region66: #{custom-call.8} parent=1 // pred_region
      %p422 = scmp.gt.s32.totalorder 1, 0
      // Predicated region
      $region68: #{custom-call.8} parent=66 // pred_check
        %p423 = pneg %p422
      $region69: #{custom-call.8} parent=66 // pred_check_branch
        %425 = sbr.rel (%p423) target = $region71
      $region70: #{custom-call.8} parent=66 // pred_region
        %s426 = sshra.s32 1, 3
        %p427 = scmp.gt.s32.totalorder %s426, 0
        // Predicated region
        $region72: #{custom-call.8} parent=70 // pred_check
          %p428 = pneg %p427
        $region73: #{custom-call.8} parent=70 // pred_check_branch
          %430 = sbr.rel (%p428) target = $region75
        $region74: #{custom-call.8} parent=70 // pred_region
          %s431 = ssub.s32 %s426, 1
          %s432 = smul.u32 %s431, 128
          %s433 = sshra.s32 %s432, 4
          %s434 = scalar_lea.vmem [#allocation6], %s433
          %v435 = vld [vmem:[#allocation6] sm:$0xff]
          // While loop
          $region76: #{custom-call.8} parent=74 // loop_pre_header
            _
          $region77: #{custom-call.8} parent=74 // loop_header
            %s436 = sphi [#allocation6], %s458
            %s437 = sphi %s3, %s459
            %v438 = vphi %v435, %v460
            %s439 = ssub.s32 %s434, 64
            %p440 = scmp.gt.s32.totalorder %s436, %s439
          $region78: #{custom-call.8} parent=74 // loop_header_branch
            %442 = sbr.rel (%p440) target = $region82
          $region79: #{custom-call.8} parent=74 // loop_body
            %443 = vst [vmem:[%s437] sm:$0xff] %v438
            %v444 = vld [vmem:[%s436 + $0x8] sm:$0xff]
            %445 = vst [vmem:[%s437 + $0x8] sm:$0xff] %v444
            %v446 = vld [vmem:[%s436 + $0x10] sm:$0xff]
            %447 = vst [vmem:[%s437 + $0x10] sm:$0xff] %v446
            %v448 = vld [vmem:[%s436 + $0x18] sm:$0xff]
            %449 = vst [vmem:[%s437 + $0x18] sm:$0xff] %v448
            %v450 = vld [vmem:[%s436 + $0x20] sm:$0xff]
            %451 = vst [vmem:[%s437 + $0x20] sm:$0xff] %v450
            %v452 = vld [vmem:[%s436 + $0x28] sm:$0xff]
            %453 = vst [vmem:[%s437 + $0x28] sm:$0xff] %v452
            %v454 = vld [vmem:[%s436 + $0x30] sm:$0xff]
            %455 = vst [vmem:[%s437 + $0x30] sm:$0xff] %v454
            %v456 = vld [vmem:[%s436 + $0x38] sm:$0xff]
            %457 = vst [vmem:[%s437 + $0x38] sm:$0xff] %v456
          $region80: #{custom-call.8} parent=74 // loop_footer
            %s458 = scalar_lea.vmem %s436, 64
            %s459 = scalar_lea.vmem %s437, 64
            %v460 = vld [vmem:[%s436 + $0x40] sm:$0xff]
          $region81: #{custom-call.8} parent=74 // loop_footer_branch
            %461 = sbr.rel target = $region77
          $region82: #{custom-call.8} parent=74 // loop_exit
            _
          // While loop
          $region83: #{custom-call.8} parent=74 // loop_pre_header
            _
          $region84: #{custom-call.8} parent=74 // loop_header
            %s462 = sphi %s436, %s470
            %s463 = sphi %s437, %s471
            %v464 = vphi %v438, %v464
            %p465 = scmp.gt.s32.totalorder %s462, %s434
          $region85: #{custom-call.8} parent=74 // loop_header_branch
            %467 = sbr.rel (%p465) target = $region89
          $region86: #{custom-call.8} parent=74 // loop_body
            %v468 = vld [vmem:[%s462] sm:$0xff]
            %469 = vst [vmem:[%s463] sm:$0xff] %v468
          $region87: #{custom-call.8} parent=74 // loop_footer
            %s470 = scalar_lea.vmem %s462, 8
            %s471 = scalar_lea.vmem %s463, 8
          $region88: #{custom-call.8} parent=74 // loop_footer_branch
            %472 = sbr.rel target = $region84
          $region89: #{custom-call.8} parent=74 // loop_exit
            _
        $region75: #{custom-call.8} parent=70 // pred_fallthru
          _
        %s473 = sand.u32 1, 7
        %s474 = sshllo.u32 0, %s473
        %s475 = smul.u32 %s426, 128
        %s476 = sshra.s32 %s475, 4
        %s477 = scalar_lea.vmem %s3, %s476
        %s478 = smul.u32 %s426, 128
        %s479 = sshra.s32 %s478, 4
        %s480 = scalar_lea.vmem [#allocation6], %s479
        %v481 = vld [vmem:[%s480] sm:%s474]
        %482 = vst [vmem:[%s477] sm:%s474] %v481
      $region71: #{custom-call.8} parent=66 // pred_fallthru
        _
    $region67: #{custom-call.8} parent=1 // pred_fallthru
      _
    // Predicated region
    $region90: #{custom-call.8} parent=1 // pred_check
      _
    $region91: #{custom-call.8} parent=1 // pred_check_branch
      %484 = sbr.rel (0) target = $region93
    $region92: #{custom-call.8} parent=1 // pred_region
      %485 = dma.done [#allocation4], 16
    $region93: #{custom-call.8} parent=1 // pred_fallthru
      _
    // Predicated region
    $region94: #{custom-call.8} parent=1 // pred_check
      _
    $region95: #{custom-call.8} parent=1 // pred_check_branch
      %487 = sbr.rel (0) target = $region97
    $region96: #{custom-call.8} parent=1 // pred_region
      _
    $region97: #{custom-call.8} parent=1 // pred_fallthru
      _
    %488 = vsyncpa [#allocation4], 1

// kernel: custom-call.9
$region0: #{custom-call.9}
  %s0 = inlined_call_operand.vmem [shape: f32[1,32,32], index: 0, kind: input, shape index: {}]
  %s1 = inlined_call_operand.vmem [shape: f32[1,32,32], index: 1, kind: output, shape index: {}]
  $region1: #{custom-call.9} parent=0
    #allocation0 [shape = 'u8[16384]{0}', space=vmem, size = 0x4000, scoped, tag = 'operand span for operand 0']
    #allocation1 [shape = 'u8[16384]{0}', space=vmem, size = 0x4000, scoped, tag = 'operand span for operand 1']
    #allocation2 [shape = 'f32[32,32]{1,0}', space=vmem, size = 0x4000, scoped, tag = 'rescaled input a']
    // Predicated region
    $region2: #{custom-call.9} parent=1 // pred_check
      _
    $region3: #{custom-call.9} parent=1 // pred_check_branch
      %3 = sbr.rel (0) target = $region5
    $region4: #{custom-call.9} parent=1 // pred_region
      // Predicated region
      $region6: #{custom-call.9} parent=4 // pred_check
        _
      $region7: #{custom-call.9} parent=4 // pred_check_branch
        %5 = sbr.rel (0) target = $region9
      $region8: #{custom-call.9} parent=4 // pred_region
        // Predicated region
        $region21: #{custom-call.9} parent=8 // pred_check
          _
        $region22: #{custom-call.9} parent=8 // pred_check_branch
          %26 = sbr.rel (0) target = $region24
        $region23: #{custom-call.9} parent=8 // pred_region
          loop: start=0, step=1, limit=1
          $region25: #{custom-call.9} parent=23 // loop_pre_header
            _
          $region26: #{custom-call.9} parent=23 // loop_header
            %s28 = sphi 0, %s32
            %p29 = scmp.ge.s32.totalorder %s28, 1
            %s33 = sphi %s0, %s0
            %s34 = sphi [#allocation0], [#allocation0]
          $region27: #{custom-call.9} parent=23 // loop_header_branch
            %31 = sbr.rel (%p29) target = $region31
          $region28: #{custom-call.9} parent=23 // loop_body
            %v35 = vld [vmem:[%s33] sm:$0xff]
            %36 = vst [vmem:[%s34] sm:$0xff] %v35
            %v37 = vld [vmem:[%s33 + $0x8] sm:$0xff]
            %38 = vst [vmem:[%s34 + $0x8] sm:$0xff] %v37
            %v39 = vld [vmem:[%s33 + $0x10] sm:$0xff]
            %40 = vst [vmem:[%s34 + $0x10] sm:$0xff] %v39
            %v41 = vld [vmem:[%s33 + $0x18] sm:$0xff]
            %42 = vst [vmem:[%s34 + $0x18] sm:$0xff] %v41
          $region29: #{custom-call.9} parent=23 // loop_footer
            %s32 = sadd.s32 1, %s28
          $region30: #{custom-call.9} parent=23 // loop_footer_branch
            %27 = sbr.rel target = $region26
          $region31: #{custom-call.9} parent=23 // loop_exit
            _
        $region24: #{custom-call.9} parent=8 // pred_fallthru
          _
        // Predicated region
        $region32: #{custom-call.9} parent=8 // pred_check
          _
        $region33: #{custom-call.9} parent=8 // pred_check_branch
          %44 = sbr.rel target = $region35
        $region34: #{custom-call.9} parent=8 // pred_region
          _
        $region35: #{custom-call.9} parent=8 // pred_fallthru
          _
      $region9: #{custom-call.9} parent=4 // pred_fallthru
        _
      // Predicated region
      $region10: #{custom-call.9} parent=4 // pred_check
        _
      $region11: #{custom-call.9} parent=4 // pred_check_branch
        %7 = sbr.rel target = $region13
      $region12: #{custom-call.9} parent=4 // pred_region
        loop: start=0, step=1, limit=1
        $region14: #{custom-call.9} parent=12 // loop_pre_header
          _
        $region15: #{custom-call.9} parent=12 // loop_header
          %s10 = sphi 0, %s14
          %p11 = scmp.ge.s32.totalorder %s10, 1
          %s15 = sphi %s0, %s0
          %s16 = sphi [#allocation0], [#allocation0]
        $region16: #{custom-call.9} parent=12 // loop_header_branch
          %13 = sbr.rel (%p11) target = $region20
        $region17: #{custom-call.9} parent=12 // loop_body
          %v17 = vld [vmem:[%s15] sm:$0xff]
          %18 = vst [vmem:[%s16] sm:$0xff] %v17
          %v19 = vld [vmem:[%s15 + $0x8] sm:$0xff]
          %20 = vst [vmem:[%s16 + $0x8] sm:$0xff] %v19
          %v21 = vld [vmem:[%s15 + $0x10] sm:$0xff]
          %22 = vst [vmem:[%s16 + $0x10] sm:$0xff] %v21
          %v23 = vld [vmem:[%s15 + $0x18] sm:$0xff]
          %24 = vst [vmem:[%s16 + $0x18] sm:$0xff] %v23
        $region18: #{custom-call.9} parent=12 // loop_footer
          %s14 = sadd.s32 1, %s10
        $region19: #{custom-call.9} parent=12 // loop_footer_branch
          %9 = sbr.rel target = $region15
        $region20: #{custom-call.9} parent=12 // loop_exit
          _
      $region13: #{custom-call.9} parent=4 // pred_fallthru
        _
    $region5: #{custom-call.9} parent=1 // pred_fallthru
      _
    %45 = vnop
    %v46 = vlaneseq
    %v47 = vand.u32 %v46, 127
    %vm48 = vcmp.lt.s32.totalorder %v47, 32
    %v49 = vlaneseq
    %v50 = vshrl.u32 %v49, 7
    %vm52 = vcmp.eq.s32.totalorder %v50, %v47
    %v53 = vld [vmem:[#allocation0] sm:$0xff]
    %v54 = vsel %vm52, %v53, 0.0
    %55 = vadd.xlane.f32.xlu0 %v54
    %v56 = vpop.xlane.xlu0 %55
    %vm57 = vcmp.le.s32.totalorder %v50, %v47
    %vm58 = vmand %vm57, %vm48
    %v59 = vsel %vm58, %v53, 0.0
    %v60 = vrcp.pop %v56
    %v61 = vmul.f32 %v59, %v60
    %62 = vst [vmem:[#allocation2] sm:$0xff] %v61
    %s63 = scalar_lea.vmem [#allocation0], 8
    %s64 = scalar_lea.vmem [#allocation2], 8
    %v65 = vlaneseq
    %v66 = vshrl.u32 %v65, 7
    %v67 = vadd.s32 %v66, 8
    %vm68 = vcmp.eq.s32.totalorder %v67, %v47
    %v69 = vld [vmem:[%s63] sm:$0xff]
    %v70 = vsel %vm68, %v69, 0.0
    %71 = vadd.xlane.f32.xlu0 %v70
    %v72 = vpop.xlane.xlu0 %71
    %vm73 = vcmp.le.s32.totalorder %v67, %v47
    %vm74 = vmand %vm73, %vm48
    %v75 = vsel %vm74, %v69, 0.0
    %v76 = vrcp.pop %v72
    %v77 = vmul.f32 %v75, %v76
    %78 = vst [vmem:[%s64] sm:$0xff] %v77
    %s79 = scalar_lea.vmem [#allocation0], 16
    %s80 = scalar_lea.vmem [#allocation2], 16
    %v81 = vlaneseq
    %v82 = vshrl.u32 %v81, 7
    %v83 = vadd.s32 %v82, 16
    %vm84 = vcmp.eq.s32.totalorder %v83, %v47
    %v85 = vld [vmem:[%s79] sm:$0xff]
    %v86 = vsel %vm84, %v85, 0.0
    %87 = vadd.xlane.f32.xlu0 %v86
    %v88 = vpop.xlane.xlu0 %87
    %vm89 = vcmp.le.s32.totalorder %v83, %v47
    %vm90 = vmand %vm89, %vm48
    %v91 = vsel %vm90, %v85, 0.0
    %v92 = vrcp.pop %v88
    %v93 = vmul.f32 %v91, %v92
    %94 = vst [vmem:[%s80] sm:$0xff] %v93
    %s95 = scalar_lea.vmem [#allocation0], 24
    %s96 = scalar_lea.vmem [#allocation2], 24
    %v97 = vlaneseq
    %v98 = vshrl.u32 %v97, 7
    %v99 = vadd.s32 %v98, 24
    %vm100 = vcmp.eq.s32.totalorder %v99, %v47
    %v101 = vld [vmem:[%s95] sm:$0xff]
    %v102 = vsel %vm100, %v101, 0.0
    %103 = vadd.xlane.f32.xlu0 %v102
    %v104 = vpop.xlane.xlu0 %103
    %vm105 = vcmp.le.s32.totalorder %v99, %v47
    %vm106 = vmand %vm105, %vm48
    %v107 = vsel %vm106, %v101, 0.0
    %v108 = vrcp.pop %v104
    %v109 = vmul.f32 %v107, %v108
    %110 = vst [vmem:[%s96] sm:$0xff] %v109
    %v111 = vlaneseq
    %v112 = vand.u32 %v111, 127
    %v113 = vlaneseq
    %v114 = vshrl.u32 %v113, 7
    %vm116 = vcmp.eq.s32.totalorder %v112, %v114
    %v117 = vsel %vm116, -1.0, 0.0
    %v118 = vlaneseq
    %v119 = vand.u32 %v118, 127
    %v120 = vlaneseq
    %v121 = vshrl.u32 %v120, 7
    %v122 = vadd.s32 %v121, 8
    %vm123 = vcmp.eq.s32.totalorder %v119, %v122
    %v124 = vsel %vm123, -1.0, 0.0
    %v125 = vlaneseq
    %v126 = vand.u32 %v125, 127
    %v127 = vlaneseq
    %v128 = vshrl.u32 %v127, 7
    %v129 = vadd.s32 %v128, 16
    %vm130 = vcmp.eq.s32.totalorder %v126, %v129
    %v131 = vsel %vm130, -1.0, 0.0
    %v132 = vlaneseq
    %v133 = vand.u32 %v132, 127
    %v134 = vlaneseq
    %v135 = vshrl.u32 %v134, 7
    %v136 = vadd.s32 %v135, 24
    %vm137 = vcmp.eq.s32.totalorder %v133, %v136
    %v138 = vlaneseq
    %v139 = vand.u32 %v138, 127
    %vm140 = vcmp.eq.s32.totalorder %v139, 31
    %v141 = vsel %vm140, 1.0, -1.0
    %v142 = vsel %vm137, %v141, 0.0
    %s143 = scalar_lea.vmem [#allocation2], 30
    %v144 = vld [vmem:[%s143] ss:$0 sm:$0xff]
    %v145 = vxor.u32 %v144, 2147483648
    %v146 = vlaneseq
    %v147 = vand.u32 %v146, 127
    %vm148 = vcmp.eq.s32.totalorder %v147, 30
    %v149 = vmul.f32 %v145, %v142
    %150 = vadd.xlane.f32.xlu0 %v149
    %v151 = vpop.xlane.xlu0 %150
    %v152 = vsel %vm148, %v151, %v142
    %s153 = scalar_lea.vmem [#allocation2], 29
    %v154 = vld [vmem:[%s153] ss:$0 sm:$0xff]
    %v155 = vxor.u32 %v154, 2147483648
    %v156 = vlaneseq
    %v157 = vand.u32 %v156, 127
    %vm158 = vcmp.eq.s32.totalorder %v157, 29
    %v159 = vmul.f32 %v155, %v152
    %160 = vadd.xlane.f32.xlu0 %v159
    %v161 = vpop.xlane.xlu0 %160
    %v162 = vsel %vm158, %v161, %v152
    %s163 = scalar_lea.vmem [#allocation2], 28
    %v164 = vld [vmem:[%s163] ss:$0 sm:$0xff]
    %v165 = vxor.u32 %v164, 2147483648
    %v166 = vlaneseq
    %v167 = vand.u32 %v166, 127
    %vm168 = vcmp.eq.s32.totalorder %v167, 28
    %v169 = vmul.f32 %v165, %v162
    %170 = vadd.xlane.f32.xlu0 %v169
    %v171 = vpop.xlane.xlu0 %170
    %v172 = vsel %vm168, %v171, %v162
    %s173 = scalar_lea.vmem [#allocation2], 27
    %v174 = vld [vmem:[%s173] ss:$0 sm:$0xff]
    %v175 = vxor.u32 %v174, 2147483648
    %v176 = vlaneseq
    %v177 = vand.u32 %v176, 127
    %vm178 = vcmp.eq.s32.totalorder %v177, 27
    %v179 = vmul.f32 %v175, %v172
    %180 = vadd.xlane.f32.xlu0 %v179
    %v181 = vpop.xlane.xlu0 %180
    %v182 = vsel %vm178, %v181, %v172
    %s183 = scalar_lea.vmem [#allocation2], 26
    %v184 = vld [vmem:[%s183] ss:$0 sm:$0xff]
    %v185 = vxor.u32 %v184, 2147483648
    %v186 = vlaneseq
    %v187 = vand.u32 %v186, 127
    %vm188 = vcmp.eq.s32.totalorder %v187, 26
    %v189 = vmul.f32 %v185, %v182
    %190 = vadd.xlane.f32.xlu0 %v189
    %v191 = vpop.xlane.xlu0 %190
    %v192 = vsel %vm188, %v191, %v182
    %s193 = scalar_lea.vmem [#allocation2], 25
    %v194 = vld [vmem:[%s193] ss:$0 sm:$0xff]
    %v195 = vxor.u32 %v194, 2147483648
    %v196 = vlaneseq
    %v197 = vand.u32 %v196, 127
    %vm198 = vcmp.eq.s32.totalorder %v197, 25
    %v199 = vmul.f32 %v195, %v192
    %200 = vadd.xlane.f32.xlu0 %v199
    %v201 = vpop.xlane.xlu0 %200
    %v202 = vsel %vm198, %v201, %v192
    %s203 = scalar_lea.vmem [#allocation2], 24
    %v204 = vld [vmem:[%s203] ss:$0 sm:$0xff]
    %v205 = vxor.u32 %v204, 2147483648
    %v206 = vlaneseq
    %v207 = vand.u32 %v206, 127
    %vm208 = vcmp.eq.s32.totalorder %v207, 24
    %v209 = vmul.f32 %v205, %v202
    %210 = vadd.xlane.f32.xlu0 %v209
    %v211 = vpop.xlane.xlu0 %210
    %v212 = vsel %vm208, %v211, %v202
    %s213 = scalar_lea.vmem [#allocation2], 23
    %v214 = vld [vmem:[%s213] ss:$0 sm:$0xff]
    %v215 = vxor.u32 %v214, 2147483648
    %v216 = vlaneseq
    %v217 = vand.u32 %v216, 127
    %vm218 = vcmp.eq.s32.totalorder %v217, 23
    %v219 = vmul.f32 %v215, %v131
    %220 = vadd.xlane.f32.xlu0 %v219
    %v221 = vpop.xlane.xlu0 %220
    %v222 = vsel %vm218, %v221, %v131
    %v223 = vmul.f32 %v215, %v212
    %224 = vadd.xlane.f32.xlu0 %v223
    %v225 = vpop.xlane.xlu0 %224
    %v226 = vsel %vm218, %v225, %v212
    %s227 = scalar_lea.vmem [#allocation2], 22
    %v228 = vld [vmem:[%s227] ss:$0 sm:$0xff]
    %v229 = vxor.u32 %v228, 2147483648
    %v230 = vlaneseq
    %v231 = vand.u32 %v230, 127
    %vm232 = vcmp.eq.s32.totalorder %v231, 22
    %v233 = vmul.f32 %v229, %v222
    %234 = vadd.xlane.f32.xlu0 %v233
    %v235 = vpop.xlane.xlu0 %234
    %v236 = vsel %vm232, %v235, %v222
    %v237 = vmul.f32 %v229, %v226
    %238 = vadd.xlane.f32.xlu0 %v237
    %v239 = vpop.xlane.xlu0 %238
    %v240 = vsel %vm232, %v239, %v226
    %s241 = scalar_lea.vmem [#allocation2], 21
    %v242 = vld [vmem:[%s241] ss:$0 sm:$0xff]
    %v243 = vxor.u32 %v242, 2147483648
    %v244 = vlaneseq
    %v245 = vand.u32 %v244, 127
    %vm246 = vcmp.eq.s32.totalorder %v245, 21
    %v247 = vmul.f32 %v243, %v236
    %248 = vadd.xlane.f32.xlu0 %v247
    %v249 = vpop.xlane.xlu0 %248
    %v250 = vsel %vm246, %v249, %v236
    %v251 = vmul.f32 %v243, %v240
    %252 = vadd.xlane.f32.xlu0 %v251
    %v253 = vpop.xlane.xlu0 %252
    %v254 = vsel %vm246, %v253, %v240
    %s255 = scalar_lea.vmem [#allocation2], 20
    %v256 = vld [vmem:[%s255] ss:$0 sm:$0xff]
    %v257 = vxor.u32 %v256, 2147483648
    %v258 = vlaneseq
    %v259 = vand.u32 %v258, 127
    %vm260 = vcmp.eq.s32.totalorder %v259, 20
    %v261 = vmul.f32 %v257, %v250
    %262 = vadd.xlane.f32.xlu0 %v261
    %v263 = vpop.xlane.xlu0 %262
    %v264 = vsel %vm260, %v263, %v250
    %v265 = vmul.f32 %v257, %v254
    %266 = vadd.xlane.f32.xlu0 %v265
    %v267 = vpop.xlane.xlu0 %266
    %v268 = vsel %vm260, %v267, %v254
    %s269 = scalar_lea.vmem [#allocation2], 19
    %v270 = vld [vmem:[%s269] ss:$0 sm:$0xff]
    %v271 = vxor.u32 %v270, 2147483648
    %v272 = vlaneseq
    %v273 = vand.u32 %v272, 127
    %vm274 = vcmp.eq.s32.totalorder %v273, 19
    %v275 = vmul.f32 %v271, %v264
    %276 = vadd.xlane.f32.xlu0 %v275
    %v277 = vpop.xlane.xlu0 %276
    %v278 = vsel %vm274, %v277, %v264
    %v279 = vmul.f32 %v271, %v268
    %280 = vadd.xlane.f32.xlu0 %v279
    %v281 = vpop.xlane.xlu0 %280
    %v282 = vsel %vm274, %v281, %v268
    %s283 = scalar_lea.vmem [#allocation2], 18
    %v284 = vld [vmem:[%s283] ss:$0 sm:$0xff]
    %v285 = vxor.u32 %v284, 2147483648
    %v286 = vlaneseq
    %v287 = vand.u32 %v286, 127
    %vm288 = vcmp.eq.s32.totalorder %v287, 18
    %v289 = vmul.f32 %v285, %v278
    %290 = vadd.xlane.f32.xlu0 %v289
    %v291 = vpop.xlane.xlu0 %290
    %v292 = vsel %vm288, %v291, %v278
    %v293 = vmul.f32 %v285, %v282
    %294 = vadd.xlane.f32.xlu0 %v293
    %v295 = vpop.xlane.xlu0 %294
    %v296 = vsel %vm288, %v295, %v282
    %s297 = scalar_lea.vmem [#allocation2], 17
    %v298 = vld [vmem:[%s297] ss:$0 sm:$0xff]
    %v299 = vxor.u32 %v298, 2147483648
    %v300 = vlaneseq
    %v301 = vand.u32 %v300, 127
    %vm302 = vcmp.eq.s32.totalorder %v301, 17
    %v303 = vmul.f32 %v299, %v292
    %304 = vadd.xlane.f32.xlu0 %v303
    %v305 = vpop.xlane.xlu0 %304
    %v306 = vsel %vm302, %v305, %v292
    %v307 = vmul.f32 %v299, %v296
    %308 = vadd.xlane.f32.xlu0 %v307
    %v309 = vpop.xlane.xlu0 %308
    %v310 = vsel %vm302, %v309, %v296
    %s311 = scalar_lea.vmem [#allocation2], 16
    %v312 = vld [vmem:[%s311] ss:$0 sm:$0xff]
    %v313 = vxor.u32 %v312, 2147483648
    %v314 = vlaneseq
    %v315 = vand.u32 %v314, 127
    %vm316 = vcmp.eq.s32.totalorder %v315, 16
    %v317 = vmul.f32 %v313, %v306
    %318 = vadd.xlane.f32.xlu0 %v317
    %v319 = vpop.xlane.xlu0 %318
    %v320 = vsel %vm316, %v319, %v306
    %v321 = vmul.f32 %v313, %v310
    %322 = vadd.xlane.f32.xlu0 %v321
    %v323 = vpop.xlane.xlu0 %322
    %v324 = vsel %vm316, %v323, %v310
    %s325 = scalar_lea.vmem [#allocation2], 15
    %v326 = vld [vmem:[%s325] ss:$0 sm:$0xff]
    %v327 = vxor.u32 %v326, 2147483648
    %v328 = vlaneseq
    %v329 = vand.u32 %v328, 127
    %vm330 = vcmp.eq.s32.totalorder %v329, 15
    %v331 = vmul.f32 %v327, %v124
    %332 = vadd.xlane.f32.xlu0 %v331
    %v333 = vpop.xlane.xlu0 %332
    %v334 = vsel %vm330, %v333, %v124
    %v335 = vmul.f32 %v327, %v320
    %336 = vadd.xlane.f32.xlu0 %v335
    %v337 = vpop.xlane.xlu0 %336
    %v338 = vsel %vm330, %v337, %v320
    %v339 = vmul.f32 %v327, %v324
    %340 = vadd.xlane.f32.xlu0 %v339
    %v341 = vpop.xlane.xlu0 %340
    %v342 = vsel %vm330, %v341, %v324
    %s343 = scalar_lea.vmem [#allocation2], 14
    %v344 = vld [vmem:[%s343] ss:$0 sm:$0xff]
    %v345 = vxor.u32 %v344, 2147483648
    %v346 = vlaneseq
    %v347 = vand.u32 %v346, 127
    %vm348 = vcmp.eq.s32.totalorder %v347, 14
    %v349 = vmul.f32 %v345, %v334
    %350 = vadd.xlane.f32.xlu0 %v349
    %v351 = vpop.xlane.xlu0 %350
    %v352 = vsel %vm348, %v351, %v334
    %v353 = vmul.f32 %v345, %v338
    %354 = vadd.xlane.f32.xlu0 %v353
    %v355 = vpop.xlane.xlu0 %354
    %v356 = vsel %vm348, %v355, %v338
    %v357 = vmul.f32 %v345, %v342
    %358 = vadd.xlane.f32.xlu0 %v357
    %v359 = vpop.xlane.xlu0 %358
    %v360 = vsel %vm348, %v359, %v342
    %s361 = scalar_lea.vmem [#allocation2], 13
    %v362 = vld [vmem:[%s361] ss:$0 sm:$0xff]
    %v363 = vxor.u32 %v362, 2147483648
    %v364 = vlaneseq
    %v365 = vand.u32 %v364, 127
    %vm366 = vcmp.eq.s32.totalorder %v365, 13
    %v367 = vmul.f32 %v363, %v352
    %368 = vadd.xlane.f32.xlu0 %v367
    %v369 = vpop.xlane.xlu0 %368
    %v370 = vsel %vm366, %v369, %v352
    %v371 = vmul.f32 %v363, %v356
    %372 = vadd.xlane.f32.xlu0 %v371
    %v373 = vpop.xlane.xlu0 %372
    %v374 = vsel %vm366, %v373, %v356
    %v375 = vmul.f32 %v363, %v360
    %376 = vadd.xlane.f32.xlu0 %v375
    %v377 = vpop.xlane.xlu0 %376
    %v378 = vsel %vm366, %v377, %v360
    %s379 = scalar_lea.vmem [#allocation2], 12
    %v380 = vld [vmem:[%s379] ss:$0 sm:$0xff]
    %v381 = vxor.u32 %v380, 2147483648
    %v382 = vlaneseq
    %v383 = vand.u32 %v382, 127
    %vm384 = vcmp.eq.s32.totalorder %v383, 12
    %v385 = vmul.f32 %v381, %v370
    %386 = vadd.xlane.f32.xlu0 %v385
    %v387 = vpop.xlane.xlu0 %386
    %v388 = vsel %vm384, %v387, %v370
    %v389 = vmul.f32 %v381, %v374
    %390 = vadd.xlane.f32.xlu0 %v389
    %v391 = vpop.xlane.xlu0 %390
    %v392 = vsel %vm384, %v391, %v374
    %v393 = vmul.f32 %v381, %v378
    %394 = vadd.xlane.f32.xlu0 %v393
    %v395 = vpop.xlane.xlu0 %394
    %v396 = vsel %vm384, %v395, %v378
    %s397 = scalar_lea.vmem [#allocation2], 11
    %v398 = vld [vmem:[%s397] ss:$0 sm:$0xff]
    %v399 = vxor.u32 %v398, 2147483648
    %v400 = vlaneseq
    %v401 = vand.u32 %v400, 127
    %vm402 = vcmp.eq.s32.totalorder %v401, 11
    %v403 = vmul.f32 %v399, %v388
    %404 = vadd.xlane.f32.xlu0 %v403
    %v405 = vpop.xlane.xlu0 %404
    %v406 = vsel %vm402, %v405, %v388
    %v407 = vmul.f32 %v399, %v392
    %408 = vadd.xlane.f32.xlu0 %v407
    %v409 = vpop.xlane.xlu0 %408
    %v410 = vsel %vm402, %v409, %v392
    %v411 = vmul.f32 %v399, %v396
    %412 = vadd.xlane.f32.xlu0 %v411
    %v413 = vpop.xlane.xlu0 %412
    %v414 = vsel %vm402, %v413, %v396
    %s415 = scalar_lea.vmem [#allocation2], 10
    %v416 = vld [vmem:[%s415] ss:$0 sm:$0xff]
    %v417 = vxor.u32 %v416, 2147483648
    %v418 = vlaneseq
    %v419 = vand.u32 %v418, 127
    %vm420 = vcmp.eq.s32.totalorder %v419, 10
    %v421 = vmul.f32 %v417, %v406
    %422 = vadd.xlane.f32.xlu0 %v421
    %v423 = vpop.xlane.xlu0 %422
    %v424 = vsel %vm420, %v423, %v406
    %v425 = vmul.f32 %v417, %v410
    %426 = vadd.xlane.f32.xlu0 %v425
    %v427 = vpop.xlane.xlu0 %426
    %v428 = vsel %vm420, %v427, %v410
    %v429 = vmul.f32 %v417, %v414
    %430 = vadd.xlane.f32.xlu0 %v429
    %v431 = vpop.xlane.xlu0 %430
    %v432 = vsel %vm420, %v431, %v414
    %s433 = scalar_lea.vmem [#allocation2], 9
    %v434 = vld [vmem:[%s433] ss:$0 sm:$0xff]
    %v435 = vxor.u32 %v434, 2147483648
    %v436 = vlaneseq
    %v437 = vand.u32 %v436, 127
    %vm438 = vcmp.eq.s32.totalorder %v437, 9
    %v439 = vmul.f32 %v435, %v424
    %440 = vadd.xlane.f32.xlu0 %v439
    %v441 = vpop.xlane.xlu0 %440
    %v442 = vsel %vm438, %v441, %v424
    %v443 = vmul.f32 %v435, %v428
    %444 = vadd.xlane.f32.xlu0 %v443
    %v445 = vpop.xlane.xlu0 %444
    %v446 = vsel %vm438, %v445, %v428
    %v447 = vmul.f32 %v435, %v432
    %448 = vadd.xlane.f32.xlu0 %v447
    %v449 = vpop.xlane.xlu0 %448
    %v450 = vsel %vm438, %v449, %v432
    %s451 = scalar_lea.vmem [#allocation2], 8
    %v452 = vld [vmem:[%s451] ss:$0 sm:$0xff]
    %v453 = vxor.u32 %v452, 2147483648
    %v454 = vlaneseq
    %v455 = vand.u32 %v454, 127
    %vm456 = vcmp.eq.s32.totalorder %v455, 8
    %v457 = vmul.f32 %v453, %v442
    %458 = vadd.xlane.f32.xlu0 %v457
    %v459 = vpop.xlane.xlu0 %458
    %v460 = vsel %vm456, %v459, %v442
    %v461 = vmul.f32 %v453, %v446
    %462 = vadd.xlane.f32.xlu0 %v461
    %v463 = vpop.xlane.xlu0 %462
    %v464 = vsel %vm456, %v463, %v446
    %v465 = vmul.f32 %v453, %v450
    %466 = vadd.xlane.f32.xlu0 %v465
    %v467 = vpop.xlane.xlu0 %466
    %v468 = vsel %vm456, %v467, %v450
    %s469 = scalar_lea.vmem [#allocation2], 7
    %v470 = vld [vmem:[%s469] ss:$0 sm:$0xff]
    %v471 = vxor.u32 %v470, 2147483648
    %v472 = vlaneseq
    %v473 = vand.u32 %v472, 127
    %vm474 = vcmp.eq.s32.totalorder %v473, 7
    %v475 = vmul.f32 %v471, %v117
    %476 = vadd.xlane.f32.xlu0 %v475
    %v477 = vpop.xlane.xlu0 %476
    %v478 = vsel %vm474, %v477, %v117
    %v479 = vmul.f32 %v471, %v460
    %480 = vadd.xlane.f32.xlu0 %v479
    %v481 = vpop.xlane.xlu0 %480
    %v482 = vsel %vm474, %v481, %v460
    %v483 = vmul.f32 %v471, %v464
    %484 = vadd.xlane.f32.xlu0 %v483
    %v485 = vpop.xlane.xlu0 %484
    %v486 = vsel %vm474, %v485, %v464
    %v487 = vmul.f32 %v471, %v468
    %488 = vadd.xlane.f32.xlu0 %v487
    %v489 = vpop.xlane.xlu0 %488
    %v490 = vsel %vm474, %v489, %v468
    %s491 = scalar_lea.vmem [#allocation2], 6
    %v492 = vld [vmem:[%s491] ss:$0 sm:$0xff]
    %v493 = vxor.u32 %v492, 2147483648
    %v494 = vlaneseq
    %v495 = vand.u32 %v494, 127
    %vm496 = vcmp.eq.s32.totalorder %v495, 6
    %v497 = vmul.f32 %v493, %v478
    %498 = vadd.xlane.f32.xlu0 %v497
    %v499 = vpop.xlane.xlu0 %498
    %v500 = vsel %vm496, %v499, %v478
    %v501 = vmul.f32 %v493, %v482
    %502 = vadd.xlane.f32.xlu0 %v501
    %v503 = vpop.xlane.xlu0 %502
    %v504 = vsel %vm496, %v503, %v482
    %v505 = vmul.f32 %v493, %v486
    %506 = vadd.xlane.f32.xlu0 %v505
    %v507 = vpop.xlane.xlu0 %506
    %v508 = vsel %vm496, %v507, %v486
    %v509 = vmul.f32 %v493, %v490
    %510 = vadd.xlane.f32.xlu0 %v509
    %v511 = vpop.xlane.xlu0 %510
    %v512 = vsel %vm496, %v511, %v490
    %s513 = scalar_lea.vmem [#allocation2], 5
    %v514 = vld [vmem:[%s513] ss:$0 sm:$0xff]
    %v515 = vxor.u32 %v514, 2147483648
    %v516 = vlaneseq
    %v517 = vand.u32 %v516, 127
    %vm518 = vcmp.eq.s32.totalorder %v517, 5
    %v519 = vmul.f32 %v515, %v500
    %520 = vadd.xlane.f32.xlu0 %v519
    %v521 = vpop.xlane.xlu0 %520
    %v522 = vsel %vm518, %v521, %v500
    %v523 = vmul.f32 %v515, %v504
    %524 = vadd.xlane.f32.xlu0 %v523
    %v525 = vpop.xlane.xlu0 %524
    %v526 = vsel %vm518, %v525, %v504
    %v527 = vmul.f32 %v515, %v508
    %528 = vadd.xlane.f32.xlu0 %v527
    %v529 = vpop.xlane.xlu0 %528
    %v530 = vsel %vm518, %v529, %v508
    %v531 = vmul.f32 %v515, %v512
    %532 = vadd.xlane.f32.xlu0 %v531
    %v533 = vpop.xlane.xlu0 %532
    %v534 = vsel %vm518, %v533, %v512
    %s535 = scalar_lea.vmem [#allocation2], 4
    %v536 = vld [vmem:[%s535] ss:$0 sm:$0xff]
    %v537 = vxor.u32 %v536, 2147483648
    %v538 = vlaneseq
    %v539 = vand.u32 %v538, 127
    %vm540 = vcmp.eq.s32.totalorder %v539, 4
    %v541 = vmul.f32 %v537, %v522
    %542 = vadd.xlane.f32.xlu0 %v541
    %v543 = vpop.xlane.xlu0 %542
    %v544 = vsel %vm540, %v543, %v522
    %v545 = vmul.f32 %v537, %v526
    %546 = vadd.xlane.f32.xlu0 %v545
    %v547 = vpop.xlane.xlu0 %546
    %v548 = vsel %vm540, %v547, %v526
    %v549 = vmul.f32 %v537, %v530
    %550 = vadd.xlane.f32.xlu0 %v549
    %v551 = vpop.xlane.xlu0 %550
    %v552 = vsel %vm540, %v551, %v530
    %v553 = vmul.f32 %v537, %v534
    %554 = vadd.xlane.f32.xlu0 %v553
    %v555 = vpop.xlane.xlu0 %554
    %v556 = vsel %vm540, %v555, %v534
    %s557 = scalar_lea.vmem [#allocation2], 3
    %v558 = vld [vmem:[%s557] ss:$0 sm:$0xff]
    %v559 = vxor.u32 %v558, 2147483648
    %v560 = vlaneseq
    %v561 = vand.u32 %v560, 127
    %vm562 = vcmp.eq.s32.totalorder %v561, 3
    %v563 = vmul.f32 %v559, %v544
    %564 = vadd.xlane.f32.xlu0 %v563
    %v565 = vpop.xlane.xlu0 %564
    %v566 = vsel %vm562, %v565, %v544
    %v567 = vmul.f32 %v559, %v548
    %568 = vadd.xlane.f32.xlu0 %v567
    %v569 = vpop.xlane.xlu0 %568
    %v570 = vsel %vm562, %v569, %v548
    %v571 = vmul.f32 %v559, %v552
    %572 = vadd.xlane.f32.xlu0 %v571
    %v573 = vpop.xlane.xlu0 %572
    %v574 = vsel %vm562, %v573, %v552
    %v575 = vmul.f32 %v559, %v556
    %576 = vadd.xlane.f32.xlu0 %v575
    %v577 = vpop.xlane.xlu0 %576
    %v578 = vsel %vm562, %v577, %v556
    %s579 = scalar_lea.vmem [#allocation2], 2
    %v580 = vld [vmem:[%s579] ss:$0 sm:$0xff]
    %v581 = vxor.u32 %v580, 2147483648
    %v582 = vlaneseq
    %v583 = vand.u32 %v582, 127
    %vm584 = vcmp.eq.s32.totalorder %v583, 2
    %v585 = vmul.f32 %v581, %v566
    %586 = vadd.xlane.f32.xlu0 %v585
    %v587 = vpop.xlane.xlu0 %586
    %v588 = vsel %vm584, %v587, %v566
    %v589 = vmul.f32 %v581, %v570
    %590 = vadd.xlane.f32.xlu0 %v589
    %v591 = vpop.xlane.xlu0 %590
    %v592 = vsel %vm584, %v591, %v570
    %v593 = vmul.f32 %v581, %v574
    %594 = vadd.xlane.f32.xlu0 %v593
    %v595 = vpop.xlane.xlu0 %594
    %v596 = vsel %vm584, %v595, %v574
    %v597 = vmul.f32 %v581, %v578
    %598 = vadd.xlane.f32.xlu0 %v597
    %v599 = vpop.xlane.xlu0 %598
    %v600 = vsel %vm584, %v599, %v578
    %s601 = scalar_lea.vmem [#allocation2], 1
    %v602 = vld [vmem:[%s601] ss:$0 sm:$0xff]
    %v603 = vxor.u32 %v602, 2147483648
    %v604 = vlaneseq
    %v605 = vand.u32 %v604, 127
    %vm606 = vcmp.eq.s32.totalorder %v605, 1
    %v607 = vmul.f32 %v603, %v588
    %608 = vadd.xlane.f32.xlu0 %v607
    %v609 = vpop.xlane.xlu0 %608
    %v610 = vsel %vm606, %v609, %v588
    %v611 = vmul.f32 %v603, %v592
    %612 = vadd.xlane.f32.xlu0 %v611
    %v613 = vpop.xlane.xlu0 %612
    %v614 = vsel %vm606, %v613, %v592
    %v615 = vmul.f32 %v603, %v596
    %616 = vadd.xlane.f32.xlu0 %v615
    %v617 = vpop.xlane.xlu0 %616
    %v618 = vsel %vm606, %v617, %v596
    %v619 = vmul.f32 %v603, %v600
    %620 = vadd.xlane.f32.xlu0 %v619
    %v621 = vpop.xlane.xlu0 %620
    %v622 = vsel %vm606, %v621, %v600
    %v623 = vld [vmem:[#allocation2] ss:$0 sm:$0xff]
    %v624 = vxor.u32 %v623, 2147483648
    %v625 = vlaneseq
    %v626 = vand.u32 %v625, 127
    %vm627 = vcmp.eq.s32.totalorder %v626, 0
    %v628 = vmul.f32 %v624, %v610
    %629 = vadd.xlane.f32.xlu0 %v628
    %v630 = vpop.xlane.xlu0 %629
    %v631 = vsel %vm627, %v630, %v610
    %v632 = vmul.f32 %v624, %v614
    %633 = vadd.xlane.f32.xlu0 %v632
    %v634 = vpop.xlane.xlu0 %633
    %v635 = vsel %vm627, %v634, %v614
    %v636 = vmul.f32 %v624, %v618
    %637 = vadd.xlane.f32.xlu0 %v636
    %v638 = vpop.xlane.xlu0 %637
    %v639 = vsel %vm627, %v638, %v618
    %v640 = vmul.f32 %v624, %v622
    %641 = vadd.xlane.f32.xlu0 %v640
    %v642 = vpop.xlane.xlu0 %641
    %v643 = vsel %vm627, %v642, %v622
    %v644 = vrcp.pop %v56
    %v645 = vmul.f32 %v631, %v644
    %vm646 = vweird.f32 %v56
    %v647 = vsel %vm646, %v631, %v645
    %648 = vst [vmem:[#allocation1] sm:$0xff] %v647
    %v649 = vrcp.pop %v72
    %v650 = vmul.f32 %v635, %v649
    %vm651 = vweird.f32 %v72
    %v652 = vsel %vm651, %v635, %v650
    %s653 = scalar_lea.vmem [#allocation1], 8
    %654 = vst [vmem:[%s653] sm:$0xff] %v652
    %v655 = vrcp.pop %v88
    %v656 = vmul.f32 %v639, %v655
    %vm657 = vweird.f32 %v88
    %v658 = vsel %vm657, %v639, %v656
    %s659 = scalar_lea.vmem [#allocation1], 16
    %660 = vst [vmem:[%s659] sm:$0xff] %v658
    %v661 = vrcp.pop %v104
    %v662 = vmul.f32 %v643, %v661
    %vm663 = vweird.f32 %v104
    %v664 = vsel %vm663, %v643, %v662
    %s665 = scalar_lea.vmem [#allocation1], 24
    %666 = vst [vmem:[%s665] sm:$0xff] %v664
    // Predicated region
    $region36: #{custom-call.9} parent=1 // pred_check
      _
    $region37: #{custom-call.9} parent=1 // pred_check_branch
      %668 = sbr.rel (0) target = $region39
    $region38: #{custom-call.9} parent=1 // pred_region
      // Predicated region
      $region40: #{custom-call.9} parent=38 // pred_check
        _
      $region41: #{custom-call.9} parent=38 // pred_check_branch
        %670 = sbr.rel (0) target = $region43
      $region42: #{custom-call.9} parent=38 // pred_region
        // Predicated region
        $region55: #{custom-call.9} parent=42 // pred_check
          _
        $region56: #{custom-call.9} parent=42 // pred_check_branch
          %691 = sbr.rel (0) target = $region58
        $region57: #{custom-call.9} parent=42 // pred_region
          loop: start=0, step=1, limit=1
          $region59: #{custom-call.9} parent=57 // loop_pre_header
            _
          $region60: #{custom-call.9} parent=57 // loop_header
            %s693 = sphi 0, %s697
            %p694 = scmp.ge.s32.totalorder %s693, 1
            %s698 = sphi [#allocation1], [#allocation1]
            %s699 = sphi %s1, %s1
          $region61: #{custom-call.9} parent=57 // loop_header_branch
            %696 = sbr.rel (%p694) target = $region65
          $region62: #{custom-call.9} parent=57 // loop_body
            %v700 = vld [vmem:[%s698] sm:$0xff]
            %701 = vst [vmem:[%s699] sm:$0xff] %v700
            %v702 = vld [vmem:[%s698 + $0x8] sm:$0xff]
            %703 = vst [vmem:[%s699 + $0x8] sm:$0xff] %v702
            %v704 = vld [vmem:[%s698 + $0x10] sm:$0xff]
            %705 = vst [vmem:[%s699 + $0x10] sm:$0xff] %v704
            %v706 = vld [vmem:[%s698 + $0x18] sm:$0xff]
            %707 = vst [vmem:[%s699 + $0x18] sm:$0xff] %v706
          $region63: #{custom-call.9} parent=57 // loop_footer
            %s697 = sadd.s32 1, %s693
          $region64: #{custom-call.9} parent=57 // loop_footer_branch
            %692 = sbr.rel target = $region60
          $region65: #{custom-call.9} parent=57 // loop_exit
            _
        $region58: #{custom-call.9} parent=42 // pred_fallthru
          _
        // Predicated region
        $region66: #{custom-call.9} parent=42 // pred_check
          _
        $region67: #{custom-call.9} parent=42 // pred_check_branch
          %709 = sbr.rel target = $region69
        $region68: #{custom-call.9} parent=42 // pred_region
          _
        $region69: #{custom-call.9} parent=42 // pred_fallthru
          _
      $region43: #{custom-call.9} parent=38 // pred_fallthru
        _
      // Predicated region
      $region44: #{custom-call.9} parent=38 // pred_check
        _
      $region45: #{custom-call.9} parent=38 // pred_check_branch
        %672 = sbr.rel target = $region47
      $region46: #{custom-call.9} parent=38 // pred_region
        loop: start=0, step=1, limit=1
        $region48: #{custom-call.9} parent=46 // loop_pre_header
          _
        $region49: #{custom-call.9} parent=46 // loop_header
          %s675 = sphi 0, %s679
          %p676 = scmp.ge.s32.totalorder %s675, 1
          %s680 = sphi [#allocation1], [#allocation1]
          %s681 = sphi %s1, %s1
        $region50: #{custom-call.9} parent=46 // loop_header_branch
          %678 = sbr.rel (%p676) target = $region54
        $region51: #{custom-call.9} parent=46 // loop_body
          %v682 = vld [vmem:[%s680] sm:$0xff]
          %683 = vst [vmem:[%s681] sm:$0xff] %v682
          %v684 = vld [vmem:[%s680 + $0x8] sm:$0xff]
          %685 = vst [vmem:[%s681 + $0x8] sm:$0xff] %v684
          %v686 = vld [vmem:[%s680 + $0x10] sm:$0xff]
          %687 = vst [vmem:[%s681 + $0x10] sm:$0xff] %v686
          %v688 = vld [vmem:[%s680 + $0x18] sm:$0xff]
          %689 = vst [vmem:[%s681 + $0x18] sm:$0xff] %v688
        $region52: #{custom-call.9} parent=46 // loop_footer
          %s679 = sadd.s32 1, %s675
        $region53: #{custom-call.9} parent=46 // loop_footer_branch
          %674 = sbr.rel target = $region49
        $region54: #{custom-call.9} parent=46 // loop_exit
          _
      $region47: #{custom-call.9} parent=38 // pred_fallthru
        _
    $region39: #{custom-call.9} parent=1 // pred_fallthru
      _
    %710 = vnop

// kernel: custom-call.10
$region0: #{custom-call.10}
  %s0 = inlined_call_operand.vmem [shape: f32[1,32,32], index: 0, kind: input, shape index: {}]
  %s1 = inlined_call_operand.vmem [shape: f32[1,32,32], index: 1, kind: output, shape index: {}]
  $region1: #{custom-call.10} parent=0
    #allocation0 [shape = 'u8[16384]{0}', space=vmem, size = 0x4000, scoped, tag = 'operand span for operand 0']
    #allocation1 [shape = 'u8[16384]{0}', space=vmem, size = 0x4000, scoped, tag = 'operand span for operand 1']
    #allocation2 [shape = 'f32[32,32]{1,0}', space=vmem, size = 0x4000, scoped, tag = 'rescaled input a']
    // Predicated region
    $region2: #{custom-call.10} parent=1 // pred_check
      _
    $region3: #{custom-call.10} parent=1 // pred_check_branch
      %3 = sbr.rel (0) target = $region5
    $region4: #{custom-call.10} parent=1 // pred_region
      // Predicated region
      $region6: #{custom-call.10} parent=4 // pred_check
        _
      $region7: #{custom-call.10} parent=4 // pred_check_branch
        %5 = sbr.rel (0) target = $region9
      $region8: #{custom-call.10} parent=4 // pred_region
        // Predicated region
        $region21: #{custom-call.10} parent=8 // pred_check
          _
        $region22: #{custom-call.10} parent=8 // pred_check_branch
          %26 = sbr.rel (0) target = $region24
        $region23: #{custom-call.10} parent=8 // pred_region
          loop: start=0, step=1, limit=1
          $region25: #{custom-call.10} parent=23 // loop_pre_header
            _
          $region26: #{custom-call.10} parent=23 // loop_header
            %s28 = sphi 0, %s32
            %p29 = scmp.ge.s32.totalorder %s28, 1
            %s33 = sphi %s0, %s0
            %s34 = sphi [#allocation0], [#allocation0]
          $region27: #{custom-call.10} parent=23 // loop_header_branch
            %31 = sbr.rel (%p29) target = $region31
          $region28: #{custom-call.10} parent=23 // loop_body
            %v35 = vld [vmem:[%s33] sm:$0xff]
            %36 = vst [vmem:[%s34] sm:$0xff] %v35
            %v37 = vld [vmem:[%s33 + $0x8] sm:$0xff]
            %38 = vst [vmem:[%s34 + $0x8] sm:$0xff] %v37
            %v39 = vld [vmem:[%s33 + $0x10] sm:$0xff]
            %40 = vst [vmem:[%s34 + $0x10] sm:$0xff] %v39
            %v41 = vld [vmem:[%s33 + $0x18] sm:$0xff]
            %42 = vst [vmem:[%s34 + $0x18] sm:$0xff] %v41
          $region29: #{custom-call.10} parent=23 // loop_footer
            %s32 = sadd.s32 1, %s28
          $region30: #{custom-call.10} parent=23 // loop_footer_branch
            %27 = sbr.rel target = $region26
          $region31: #{custom-call.10} parent=23 // loop_exit
            _
        $region24: #{custom-call.10} parent=8 // pred_fallthru
          _
        // Predicated region
        $region32: #{custom-call.10} parent=8 // pred_check
          _
        $region33: #{custom-call.10} parent=8 // pred_check_branch
          %44 = sbr.rel target = $region35
        $region34: #{custom-call.10} parent=8 // pred_region
          _
        $region35: #{custom-call.10} parent=8 // pred_fallthru
          _
      $region9: #{custom-call.10} parent=4 // pred_fallthru
        _
      // Predicated region
      $region10: #{custom-call.10} parent=4 // pred_check
        _
      $region11: #{custom-call.10} parent=4 // pred_check_branch
        %7 = sbr.rel target = $region13
      $region12: #{custom-call.10} parent=4 // pred_region
        loop: start=0, step=1, limit=1
        $region14: #{custom-call.10} parent=12 // loop_pre_header
          _
        $region15: #{custom-call.10} parent=12 // loop_header
          %s10 = sphi 0, %s14
          %p11 = scmp.ge.s32.totalorder %s10, 1
          %s15 = sphi %s0, %s0
          %s16 = sphi [#allocation0], [#allocation0]
        $region16: #{custom-call.10} parent=12 // loop_header_branch
          %13 = sbr.rel (%p11) target = $region20
        $region17: #{custom-call.10} parent=12 // loop_body
          %v17 = vld [vmem:[%s15] sm:$0xff]
          %18 = vst [vmem:[%s16] sm:$0xff] %v17
          %v19 = vld [vmem:[%s15 + $0x8] sm:$0xff]
          %20 = vst [vmem:[%s16 + $0x8] sm:$0xff] %v19
          %v21 = vld [vmem:[%s15 + $0x10] sm:$0xff]
          %22 = vst [vmem:[%s16 + $0x10] sm:$0xff] %v21
          %v23 = vld [vmem:[%s15 + $0x18] sm:$0xff]
          %24 = vst [vmem:[%s16 + $0x18] sm:$0xff] %v23
        $region18: #{custom-call.10} parent=12 // loop_footer
          %s14 = sadd.s32 1, %s10
        $region19: #{custom-call.10} parent=12 // loop_footer_branch
          %9 = sbr.rel target = $region15
        $region20: #{custom-call.10} parent=12 // loop_exit
          _
      $region13: #{custom-call.10} parent=4 // pred_fallthru
        _
    $region5: #{custom-call.10} parent=1 // pred_fallthru
      _
    %45 = vnop
    %v46 = vlaneseq
    %v47 = vand.u32 %v46, 127
    %vm48 = vcmp.lt.s32.totalorder %v47, 32
    %v49 = vlaneseq
    %v50 = vshrl.u32 %v49, 7
    %vm52 = vcmp.eq.s32.totalorder %v50, %v47
    %v53 = vld [vmem:[#allocation0] sm:$0xff]
    %v54 = vsel %vm52, %v53, 0.0
    %55 = vadd.xlane.f32.xlu0 %v54
    %v56 = vpop.xlane.xlu0 %55
    %vm57 = vcmp.ge.s32.totalorder %v50, %v47
    %vm58 = vmand %vm57, %vm48
    %v59 = vsel %vm58, %v53, 0.0
    %v60 = vrcp.pop %v56
    %v61 = vmul.f32 %v59, %v60
    %62 = vst [vmem:[#allocation2] sm:$0xff] %v61
    %s63 = scalar_lea.vmem [#allocation0], 8
    %s64 = scalar_lea.vmem [#allocation2], 8
    %v65 = vlaneseq
    %v66 = vshrl.u32 %v65, 7
    %v67 = vadd.s32 %v66, 8
    %vm68 = vcmp.eq.s32.totalorder %v67, %v47
    %v69 = vld [vmem:[%s63] sm:$0xff]
    %v70 = vsel %vm68, %v69, 0.0
    %71 = vadd.xlane.f32.xlu0 %v70
    %v72 = vpop.xlane.xlu0 %71
    %vm73 = vcmp.ge.s32.totalorder %v67, %v47
    %vm74 = vmand %vm73, %vm48
    %v75 = vsel %vm74, %v69, 0.0
    %v76 = vrcp.pop %v72
    %v77 = vmul.f32 %v75, %v76
    %78 = vst [vmem:[%s64] sm:$0xff] %v77
    %s79 = scalar_lea.vmem [#allocation0], 16
    %s80 = scalar_lea.vmem [#allocation2], 16
    %v81 = vlaneseq
    %v82 = vshrl.u32 %v81, 7
    %v83 = vadd.s32 %v82, 16
    %vm84 = vcmp.eq.s32.totalorder %v83, %v47
    %v85 = vld [vmem:[%s79] sm:$0xff]
    %v86 = vsel %vm84, %v85, 0.0
    %87 = vadd.xlane.f32.xlu0 %v86
    %v88 = vpop.xlane.xlu0 %87
    %vm89 = vcmp.ge.s32.totalorder %v83, %v47
    %vm90 = vmand %vm89, %vm48
    %v91 = vsel %vm90, %v85, 0.0
    %v92 = vrcp.pop %v88
    %v93 = vmul.f32 %v91, %v92
    %94 = vst [vmem:[%s80] sm:$0xff] %v93
    %s95 = scalar_lea.vmem [#allocation0], 24
    %s96 = scalar_lea.vmem [#allocation2], 24
    %v97 = vlaneseq
    %v98 = vshrl.u32 %v97, 7
    %v99 = vadd.s32 %v98, 24
    %vm100 = vcmp.eq.s32.totalorder %v99, %v47
    %v101 = vld [vmem:[%s95] sm:$0xff]
    %v102 = vsel %vm100, %v101, 0.0
    %103 = vadd.xlane.f32.xlu0 %v102
    %v104 = vpop.xlane.xlu0 %103
    %vm105 = vcmp.ge.s32.totalorder %v99, %v47
    %vm106 = vmand %vm105, %vm48
    %v107 = vsel %vm106, %v101, 0.0
    %v108 = vrcp.pop %v104
    %v109 = vmul.f32 %v107, %v108
    %110 = vst [vmem:[%s96] sm:$0xff] %v109
    %v111 = vlaneseq
    %v112 = vand.u32 %v111, 127
    %v113 = vlaneseq
    %v114 = vshrl.u32 %v113, 7
    %vm116 = vcmp.eq.s32.totalorder %v112, %v114
    %v117 = vlaneseq
    %v118 = vand.u32 %v117, 127
    %vm119 = vcmp.eq.s32.totalorder %v118, 0
    %v120 = vsel %vm119, 1.0, -1.0
    %v121 = vsel %vm116, %v120, 0.0
    %v122 = vlaneseq
    %v123 = vand.u32 %v122, 127
    %v124 = vlaneseq
    %v125 = vshrl.u32 %v124, 7
    %v126 = vadd.s32 %v125, 8
    %vm127 = vcmp.eq.s32.totalorder %v123, %v126
    %v128 = vsel %vm127, -1.0, 0.0
    %v129 = vlaneseq
    %v130 = vand.u32 %v129, 127
    %v131 = vlaneseq
    %v132 = vshrl.u32 %v131, 7
    %v133 = vadd.s32 %v132, 16
    %vm134 = vcmp.eq.s32.totalorder %v130, %v133
    %v135 = vsel %vm134, -1.0, 0.0
    %v136 = vlaneseq
    %v137 = vand.u32 %v136, 127
    %v138 = vlaneseq
    %v139 = vshrl.u32 %v138, 7
    %v140 = vadd.s32 %v139, 24
    %vm141 = vcmp.eq.s32.totalorder %v137, %v140
    %v142 = vsel %vm141, -1.0, 0.0
    %s143 = scalar_lea.vmem [#allocation2], 1
    %v144 = vld [vmem:[%s143] ss:$0 sm:$0xff]
    %v145 = vxor.u32 %v144, 2147483648
    %v146 = vlaneseq
    %v147 = vand.u32 %v146, 127
    %vm148 = vcmp.eq.s32.totalorder %v147, 1
    %v149 = vmul.f32 %v145, %v121
    %150 = vadd.xlane.f32.xlu0 %v149
    %v151 = vpop.xlane.xlu0 %150
    %v152 = vsel %vm148, %v151, %v121
    %s153 = scalar_lea.vmem [#allocation2], 2
    %v154 = vld [vmem:[%s153] ss:$0 sm:$0xff]
    %v155 = vxor.u32 %v154, 2147483648
    %v156 = vlaneseq
    %v157 = vand.u32 %v156, 127
    %vm158 = vcmp.eq.s32.totalorder %v157, 2
    %v159 = vmul.f32 %v155, %v152
    %160 = vadd.xlane.f32.xlu0 %v159
    %v161 = vpop.xlane.xlu0 %160
    %v162 = vsel %vm158, %v161, %v152
    %s163 = scalar_lea.vmem [#allocation2], 3
    %v164 = vld [vmem:[%s163] ss:$0 sm:$0xff]
    %v165 = vxor.u32 %v164, 2147483648
    %v166 = vlaneseq
    %v167 = vand.u32 %v166, 127
    %vm168 = vcmp.eq.s32.totalorder %v167, 3
    %v169 = vmul.f32 %v165, %v162
    %170 = vadd.xlane.f32.xlu0 %v169
    %v171 = vpop.xlane.xlu0 %170
    %v172 = vsel %vm168, %v171, %v162
    %s173 = scalar_lea.vmem [#allocation2], 4
    %v174 = vld [vmem:[%s173] ss:$0 sm:$0xff]
    %v175 = vxor.u32 %v174, 2147483648
    %v176 = vlaneseq
    %v177 = vand.u32 %v176, 127
    %vm178 = vcmp.eq.s32.totalorder %v177, 4
    %v179 = vmul.f32 %v175, %v172
    %180 = vadd.xlane.f32.xlu0 %v179
    %v181 = vpop.xlane.xlu0 %180
    %v182 = vsel %vm178, %v181, %v172
    %s183 = scalar_lea.vmem [#allocation2], 5
    %v184 = vld [vmem:[%s183] ss:$0 sm:$0xff]
    %v185 = vxor.u32 %v184, 2147483648
    %v186 = vlaneseq
    %v187 = vand.u32 %v186, 127
    %vm188 = vcmp.eq.s32.totalorder %v187, 5
    %v189 = vmul.f32 %v185, %v182
    %190 = vadd.xlane.f32.xlu0 %v189
    %v191 = vpop.xlane.xlu0 %190
    %v192 = vsel %vm188, %v191, %v182
    %s193 = scalar_lea.vmem [#allocation2], 6
    %v194 = vld [vmem:[%s193] ss:$0 sm:$0xff]
    %v195 = vxor.u32 %v194, 2147483648
    %v196 = vlaneseq
    %v197 = vand.u32 %v196, 127
    %vm198 = vcmp.eq.s32.totalorder %v197, 6
    %v199 = vmul.f32 %v195, %v192
    %200 = vadd.xlane.f32.xlu0 %v199
    %v201 = vpop.xlane.xlu0 %200
    %v202 = vsel %vm198, %v201, %v192
    %s203 = scalar_lea.vmem [#allocation2], 7
    %v204 = vld [vmem:[%s203] ss:$0 sm:$0xff]
    %v205 = vxor.u32 %v204, 2147483648
    %v206 = vlaneseq
    %v207 = vand.u32 %v206, 127
    %vm208 = vcmp.eq.s32.totalorder %v207, 7
    %v209 = vmul.f32 %v205, %v202
    %210 = vadd.xlane.f32.xlu0 %v209
    %v211 = vpop.xlane.xlu0 %210
    %v212 = vsel %vm208, %v211, %v202
    %s213 = scalar_lea.vmem [#allocation2], 8
    %v214 = vld [vmem:[%s213] ss:$0 sm:$0xff]
    %v215 = vxor.u32 %v214, 2147483648
    %v216 = vlaneseq
    %v217 = vand.u32 %v216, 127
    %vm218 = vcmp.eq.s32.totalorder %v217, 8
    %v219 = vmul.f32 %v215, %v212
    %220 = vadd.xlane.f32.xlu0 %v219
    %v221 = vpop.xlane.xlu0 %220
    %v222 = vsel %vm218, %v221, %v212
    %v223 = vmul.f32 %v215, %v128
    %224 = vadd.xlane.f32.xlu0 %v223
    %v225 = vpop.xlane.xlu0 %224
    %v226 = vsel %vm218, %v225, %v128
    %s227 = scalar_lea.vmem [#allocation2], 9
    %v228 = vld [vmem:[%s227] ss:$0 sm:$0xff]
    %v229 = vxor.u32 %v228, 2147483648
    %v230 = vlaneseq
    %v231 = vand.u32 %v230, 127
    %vm232 = vcmp.eq.s32.totalorder %v231, 9
    %v233 = vmul.f32 %v229, %v222
    %234 = vadd.xlane.f32.xlu0 %v233
    %v235 = vpop.xlane.xlu0 %234
    %v236 = vsel %vm232, %v235, %v222
    %v237 = vmul.f32 %v229, %v226
    %238 = vadd.xlane.f32.xlu0 %v237
    %v239 = vpop.xlane.xlu0 %238
    %v240 = vsel %vm232, %v239, %v226
    %s241 = scalar_lea.vmem [#allocation2], 10
    %v242 = vld [vmem:[%s241] ss:$0 sm:$0xff]
    %v243 = vxor.u32 %v242, 2147483648
    %v244 = vlaneseq
    %v245 = vand.u32 %v244, 127
    %vm246 = vcmp.eq.s32.totalorder %v245, 10
    %v247 = vmul.f32 %v243, %v236
    %248 = vadd.xlane.f32.xlu0 %v247
    %v249 = vpop.xlane.xlu0 %248
    %v250 = vsel %vm246, %v249, %v236
    %v251 = vmul.f32 %v243, %v240
    %252 = vadd.xlane.f32.xlu0 %v251
    %v253 = vpop.xlane.xlu0 %252
    %v254 = vsel %vm246, %v253, %v240
    %s255 = scalar_lea.vmem [#allocation2], 11
    %v256 = vld [vmem:[%s255] ss:$0 sm:$0xff]
    %v257 = vxor.u32 %v256, 2147483648
    %v258 = vlaneseq
    %v259 = vand.u32 %v258, 127
    %vm260 = vcmp.eq.s32.totalorder %v259, 11
    %v261 = vmul.f32 %v257, %v250
    %262 = vadd.xlane.f32.xlu0 %v261
    %v263 = vpop.xlane.xlu0 %262
    %v264 = vsel %vm260, %v263, %v250
    %v265 = vmul.f32 %v257, %v254
    %266 = vadd.xlane.f32.xlu0 %v265
    %v267 = vpop.xlane.xlu0 %266
    %v268 = vsel %vm260, %v267, %v254
    %s269 = scalar_lea.vmem [#allocation2], 12
    %v270 = vld [vmem:[%s269] ss:$0 sm:$0xff]
    %v271 = vxor.u32 %v270, 2147483648
    %v272 = vlaneseq
    %v273 = vand.u32 %v272, 127
    %vm274 = vcmp.eq.s32.totalorder %v273, 12
    %v275 = vmul.f32 %v271, %v264
    %276 = vadd.xlane.f32.xlu0 %v275
    %v277 = vpop.xlane.xlu0 %276
    %v278 = vsel %vm274, %v277, %v264
    %v279 = vmul.f32 %v271, %v268
    %280 = vadd.xlane.f32.xlu0 %v279
    %v281 = vpop.xlane.xlu0 %280
    %v282 = vsel %vm274, %v281, %v268
    %s283 = scalar_lea.vmem [#allocation2], 13
    %v284 = vld [vmem:[%s283] ss:$0 sm:$0xff]
    %v285 = vxor.u32 %v284, 2147483648
    %v286 = vlaneseq
    %v287 = vand.u32 %v286, 127
    %vm288 = vcmp.eq.s32.totalorder %v287, 13
    %v289 = vmul.f32 %v285, %v278
    %290 = vadd.xlane.f32.xlu0 %v289
    %v291 = vpop.xlane.xlu0 %290
    %v292 = vsel %vm288, %v291, %v278
    %v293 = vmul.f32 %v285, %v282
    %294 = vadd.xlane.f32.xlu0 %v293
    %v295 = vpop.xlane.xlu0 %294
    %v296 = vsel %vm288, %v295, %v282
    %s297 = scalar_lea.vmem [#allocation2], 14
    %v298 = vld [vmem:[%s297] ss:$0 sm:$0xff]
    %v299 = vxor.u32 %v298, 2147483648
    %v300 = vlaneseq
    %v301 = vand.u32 %v300, 127
    %vm302 = vcmp.eq.s32.totalorder %v301, 14
    %v303 = vmul.f32 %v299, %v292
    %304 = vadd.xlane.f32.xlu0 %v303
    %v305 = vpop.xlane.xlu0 %304
    %v306 = vsel %vm302, %v305, %v292
    %v307 = vmul.f32 %v299, %v296
    %308 = vadd.xlane.f32.xlu0 %v307
    %v309 = vpop.xlane.xlu0 %308
    %v310 = vsel %vm302, %v309, %v296
    %s311 = scalar_lea.vmem [#allocation2], 15
    %v312 = vld [vmem:[%s311] ss:$0 sm:$0xff]
    %v313 = vxor.u32 %v312, 2147483648
    %v314 = vlaneseq
    %v315 = vand.u32 %v314, 127
    %vm316 = vcmp.eq.s32.totalorder %v315, 15
    %v317 = vmul.f32 %v313, %v306
    %318 = vadd.xlane.f32.xlu0 %v317
    %v319 = vpop.xlane.xlu0 %318
    %v320 = vsel %vm316, %v319, %v306
    %v321 = vmul.f32 %v313, %v310
    %322 = vadd.xlane.f32.xlu0 %v321
    %v323 = vpop.xlane.xlu0 %322
    %v324 = vsel %vm316, %v323, %v310
    %s325 = scalar_lea.vmem [#allocation2], 16
    %v326 = vld [vmem:[%s325] ss:$0 sm:$0xff]
    %v327 = vxor.u32 %v326, 2147483648
    %v328 = vlaneseq
    %v329 = vand.u32 %v328, 127
    %vm330 = vcmp.eq.s32.totalorder %v329, 16
    %v331 = vmul.f32 %v327, %v320
    %332 = vadd.xlane.f32.xlu0 %v331
    %v333 = vpop.xlane.xlu0 %332
    %v334 = vsel %vm330, %v333, %v320
    %v335 = vmul.f32 %v327, %v324
    %336 = vadd.xlane.f32.xlu0 %v335
    %v337 = vpop.xlane.xlu0 %336
    %v338 = vsel %vm330, %v337, %v324
    %v339 = vmul.f32 %v327, %v135
    %340 = vadd.xlane.f32.xlu0 %v339
    %v341 = vpop.xlane.xlu0 %340
    %v342 = vsel %vm330, %v341, %v135
    %s343 = scalar_lea.vmem [#allocation2], 17
    %v344 = vld [vmem:[%s343] ss:$0 sm:$0xff]
    %v345 = vxor.u32 %v344, 2147483648
    %v346 = vlaneseq
    %v347 = vand.u32 %v346, 127
    %vm348 = vcmp.eq.s32.totalorder %v347, 17
    %v349 = vmul.f32 %v345, %v334
    %350 = vadd.xlane.f32.xlu0 %v349
    %v351 = vpop.xlane.xlu0 %350
    %v352 = vsel %vm348, %v351, %v334
    %v353 = vmul.f32 %v345, %v338
    %354 = vadd.xlane.f32.xlu0 %v353
    %v355 = vpop.xlane.xlu0 %354
    %v356 = vsel %vm348, %v355, %v338
    %v357 = vmul.f32 %v345, %v342
    %358 = vadd.xlane.f32.xlu0 %v357
    %v359 = vpop.xlane.xlu0 %358
    %v360 = vsel %vm348, %v359, %v342
    %s361 = scalar_lea.vmem [#allocation2], 18
    %v362 = vld [vmem:[%s361] ss:$0 sm:$0xff]
    %v363 = vxor.u32 %v362, 2147483648
    %v364 = vlaneseq
    %v365 = vand.u32 %v364, 127
    %vm366 = vcmp.eq.s32.totalorder %v365, 18
    %v367 = vmul.f32 %v363, %v352
    %368 = vadd.xlane.f32.xlu0 %v367
    %v369 = vpop.xlane.xlu0 %368
    %v370 = vsel %vm366, %v369, %v352
    %v371 = vmul.f32 %v363, %v356
    %372 = vadd.xlane.f32.xlu0 %v371
    %v373 = vpop.xlane.xlu0 %372
    %v374 = vsel %vm366, %v373, %v356
    %v375 = vmul.f32 %v363, %v360
    %376 = vadd.xlane.f32.xlu0 %v375
    %v377 = vpop.xlane.xlu0 %376
    %v378 = vsel %vm366, %v377, %v360
    %s379 = scalar_lea.vmem [#allocation2], 19
    %v380 = vld [vmem:[%s379] ss:$0 sm:$0xff]
    %v381 = vxor.u32 %v380, 2147483648
    %v382 = vlaneseq
    %v383 = vand.u32 %v382, 127
    %vm384 = vcmp.eq.s32.totalorder %v383, 19
    %v385 = vmul.f32 %v381, %v370
    %386 = vadd.xlane.f32.xlu0 %v385
    %v387 = vpop.xlane.xlu0 %386
    %v388 = vsel %vm384, %v387, %v370
    %v389 = vmul.f32 %v381, %v374
    %390 = vadd.xlane.f32.xlu0 %v389
    %v391 = vpop.xlane.xlu0 %390
    %v392 = vsel %vm384, %v391, %v374
    %v393 = vmul.f32 %v381, %v378
    %394 = vadd.xlane.f32.xlu0 %v393
    %v395 = vpop.xlane.xlu0 %394
    %v396 = vsel %vm384, %v395, %v378
    %s397 = scalar_lea.vmem [#allocation2], 20
    %v398 = vld [vmem:[%s397] ss:$0 sm:$0xff]
    %v399 = vxor.u32 %v398, 2147483648
    %v400 = vlaneseq
    %v401 = vand.u32 %v400, 127
    %vm402 = vcmp.eq.s32.totalorder %v401, 20
    %v403 = vmul.f32 %v399, %v388
    %404 = vadd.xlane.f32.xlu0 %v403
    %v405 = vpop.xlane.xlu0 %404
    %v406 = vsel %vm402, %v405, %v388
    %v407 = vmul.f32 %v399, %v392
    %408 = vadd.xlane.f32.xlu0 %v407
    %v409 = vpop.xlane.xlu0 %408
    %v410 = vsel %vm402, %v409, %v392
    %v411 = vmul.f32 %v399, %v396
    %412 = vadd.xlane.f32.xlu0 %v411
    %v413 = vpop.xlane.xlu0 %412
    %v414 = vsel %vm402, %v413, %v396
    %s415 = scalar_lea.vmem [#allocation2], 21
    %v416 = vld [vmem:[%s415] ss:$0 sm:$0xff]
    %v417 = vxor.u32 %v416, 2147483648
    %v418 = vlaneseq
    %v419 = vand.u32 %v418, 127
    %vm420 = vcmp.eq.s32.totalorder %v419, 21
    %v421 = vmul.f32 %v417, %v406
    %422 = vadd.xlane.f32.xlu0 %v421
    %v423 = vpop.xlane.xlu0 %422
    %v424 = vsel %vm420, %v423, %v406
    %v425 = vmul.f32 %v417, %v410
    %426 = vadd.xlane.f32.xlu0 %v425
    %v427 = vpop.xlane.xlu0 %426
    %v428 = vsel %vm420, %v427, %v410
    %v429 = vmul.f32 %v417, %v414
    %430 = vadd.xlane.f32.xlu0 %v429
    %v431 = vpop.xlane.xlu0 %430
    %v432 = vsel %vm420, %v431, %v414
    %s433 = scalar_lea.vmem [#allocation2], 22
    %v434 = vld [vmem:[%s433] ss:$0 sm:$0xff]
    %v435 = vxor.u32 %v434, 2147483648
    %v436 = vlaneseq
    %v437 = vand.u32 %v436, 127
    %vm438 = vcmp.eq.s32.totalorder %v437, 22
    %v439 = vmul.f32 %v435, %v424
    %440 = vadd.xlane.f32.xlu0 %v439
    %v441 = vpop.xlane.xlu0 %440
    %v442 = vsel %vm438, %v441, %v424
    %v443 = vmul.f32 %v435, %v428
    %444 = vadd.xlane.f32.xlu0 %v443
    %v445 = vpop.xlane.xlu0 %444
    %v446 = vsel %vm438, %v445, %v428
    %v447 = vmul.f32 %v435, %v432
    %448 = vadd.xlane.f32.xlu0 %v447
    %v449 = vpop.xlane.xlu0 %448
    %v450 = vsel %vm438, %v449, %v432
    %s451 = scalar_lea.vmem [#allocation2], 23
    %v452 = vld [vmem:[%s451] ss:$0 sm:$0xff]
    %v453 = vxor.u32 %v452, 2147483648
    %v454 = vlaneseq
    %v455 = vand.u32 %v454, 127
    %vm456 = vcmp.eq.s32.totalorder %v455, 23
    %v457 = vmul.f32 %v453, %v442
    %458 = vadd.xlane.f32.xlu0 %v457
    %v459 = vpop.xlane.xlu0 %458
    %v460 = vsel %vm456, %v459, %v442
    %v461 = vmul.f32 %v453, %v446
    %462 = vadd.xlane.f32.xlu0 %v461
    %v463 = vpop.xlane.xlu0 %462
    %v464 = vsel %vm456, %v463, %v446
    %v465 = vmul.f32 %v453, %v450
    %466 = vadd.xlane.f32.xlu0 %v465
    %v467 = vpop.xlane.xlu0 %466
    %v468 = vsel %vm456, %v467, %v450
    %s469 = scalar_lea.vmem [#allocation2], 24
    %v470 = vld [vmem:[%s469] ss:$0 sm:$0xff]
    %v471 = vxor.u32 %v470, 2147483648
    %v472 = vlaneseq
    %v473 = vand.u32 %v472, 127
    %vm474 = vcmp.eq.s32.totalorder %v473, 24
    %v475 = vmul.f32 %v471, %v460
    %476 = vadd.xlane.f32.xlu0 %v475
    %v477 = vpop.xlane.xlu0 %476
    %v478 = vsel %vm474, %v477, %v460
    %v479 = vmul.f32 %v471, %v464
    %480 = vadd.xlane.f32.xlu0 %v479
    %v481 = vpop.xlane.xlu0 %480
    %v482 = vsel %vm474, %v481, %v464
    %v483 = vmul.f32 %v471, %v468
    %484 = vadd.xlane.f32.xlu0 %v483
    %v485 = vpop.xlane.xlu0 %484
    %v486 = vsel %vm474, %v485, %v468
    %v487 = vmul.f32 %v471, %v142
    %488 = vadd.xlane.f32.xlu0 %v487
    %v489 = vpop.xlane.xlu0 %488
    %v490 = vsel %vm474, %v489, %v142
    %s491 = scalar_lea.vmem [#allocation2], 25
    %v492 = vld [vmem:[%s491] ss:$0 sm:$0xff]
    %v493 = vxor.u32 %v492, 2147483648
    %v494 = vlaneseq
    %v495 = vand.u32 %v494, 127
    %vm496 = vcmp.eq.s32.totalorder %v495, 25
    %v497 = vmul.f32 %v493, %v478
    %498 = vadd.xlane.f32.xlu0 %v497
    %v499 = vpop.xlane.xlu0 %498
    %v500 = vsel %vm496, %v499, %v478
    %v501 = vmul.f32 %v493, %v482
    %502 = vadd.xlane.f32.xlu0 %v501
    %v503 = vpop.xlane.xlu0 %502
    %v504 = vsel %vm496, %v503, %v482
    %v505 = vmul.f32 %v493, %v486
    %506 = vadd.xlane.f32.xlu0 %v505
    %v507 = vpop.xlane.xlu0 %506
    %v508 = vsel %vm496, %v507, %v486
    %v509 = vmul.f32 %v493, %v490
    %510 = vadd.xlane.f32.xlu0 %v509
    %v511 = vpop.xlane.xlu0 %510
    %v512 = vsel %vm496, %v511, %v490
    %s513 = scalar_lea.vmem [#allocation2], 26
    %v514 = vld [vmem:[%s513] ss:$0 sm:$0xff]
    %v515 = vxor.u32 %v514, 2147483648
    %v516 = vlaneseq
    %v517 = vand.u32 %v516, 127
    %vm518 = vcmp.eq.s32.totalorder %v517, 26
    %v519 = vmul.f32 %v515, %v500
    %520 = vadd.xlane.f32.xlu0 %v519
    %v521 = vpop.xlane.xlu0 %520
    %v522 = vsel %vm518, %v521, %v500
    %v523 = vmul.f32 %v515, %v504
    %524 = vadd.xlane.f32.xlu0 %v523
    %v525 = vpop.xlane.xlu0 %524
    %v526 = vsel %vm518, %v525, %v504
    %v527 = vmul.f32 %v515, %v508
    %528 = vadd.xlane.f32.xlu0 %v527
    %v529 = vpop.xlane.xlu0 %528
    %v530 = vsel %vm518, %v529, %v508
    %v531 = vmul.f32 %v515, %v512
    %532 = vadd.xlane.f32.xlu0 %v531
    %v533 = vpop.xlane.xlu0 %532
    %v534 = vsel %vm518, %v533, %v512
    %s535 = scalar_lea.vmem [#allocation2], 27
    %v536 = vld [vmem:[%s535] ss:$0 sm:$0xff]
    %v537 = vxor.u32 %v536, 2147483648
    %v538 = vlaneseq
    %v539 = vand.u32 %v538, 127
    %vm540 = vcmp.eq.s32.totalorder %v539, 27
    %v541 = vmul.f32 %v537, %v522
    %542 = vadd.xlane.f32.xlu0 %v541
    %v543 = vpop.xlane.xlu0 %542
    %v544 = vsel %vm540, %v543, %v522
    %v545 = vmul.f32 %v537, %v526
    %546 = vadd.xlane.f32.xlu0 %v545
    %v547 = vpop.xlane.xlu0 %546
    %v548 = vsel %vm540, %v547, %v526
    %v549 = vmul.f32 %v537, %v530
    %550 = vadd.xlane.f32.xlu0 %v549
    %v551 = vpop.xlane.xlu0 %550
    %v552 = vsel %vm540, %v551, %v530
    %v553 = vmul.f32 %v537, %v534
    %554 = vadd.xlane.f32.xlu0 %v553
    %v555 = vpop.xlane.xlu0 %554
    %v556 = vsel %vm540, %v555, %v534
    %s557 = scalar_lea.vmem [#allocation2], 28
    %v558 = vld [vmem:[%s557] ss:$0 sm:$0xff]
    %v559 = vxor.u32 %v558, 2147483648
    %v560 = vlaneseq
    %v561 = vand.u32 %v560, 127
    %vm562 = vcmp.eq.s32.totalorder %v561, 28
    %v563 = vmul.f32 %v559, %v544
    %564 = vadd.xlane.f32.xlu0 %v563
    %v565 = vpop.xlane.xlu0 %564
    %v566 = vsel %vm562, %v565, %v544
    %v567 = vmul.f32 %v559, %v548
    %568 = vadd.xlane.f32.xlu0 %v567
    %v569 = vpop.xlane.xlu0 %568
    %v570 = vsel %vm562, %v569, %v548
    %v571 = vmul.f32 %v559, %v552
    %572 = vadd.xlane.f32.xlu0 %v571
    %v573 = vpop.xlane.xlu0 %572
    %v574 = vsel %vm562, %v573, %v552
    %v575 = vmul.f32 %v559, %v556
    %576 = vadd.xlane.f32.xlu0 %v575
    %v577 = vpop.xlane.xlu0 %576
    %v578 = vsel %vm562, %v577, %v556
    %s579 = scalar_lea.vmem [#allocation2], 29
    %v580 = vld [vmem:[%s579] ss:$0 sm:$0xff]
    %v581 = vxor.u32 %v580, 2147483648
    %v582 = vlaneseq
    %v583 = vand.u32 %v582, 127
    %vm584 = vcmp.eq.s32.totalorder %v583, 29
    %v585 = vmul.f32 %v581, %v566
    %586 = vadd.xlane.f32.xlu0 %v585
    %v587 = vpop.xlane.xlu0 %586
    %v588 = vsel %vm584, %v587, %v566
    %v589 = vmul.f32 %v581, %v570
    %590 = vadd.xlane.f32.xlu0 %v589
    %v591 = vpop.xlane.xlu0 %590
    %v592 = vsel %vm584, %v591, %v570
    %v593 = vmul.f32 %v581, %v574
    %594 = vadd.xlane.f32.xlu0 %v593
    %v595 = vpop.xlane.xlu0 %594
    %v596 = vsel %vm584, %v595, %v574
    %v597 = vmul.f32 %v581, %v578
    %598 = vadd.xlane.f32.xlu0 %v597
    %v599 = vpop.xlane.xlu0 %598
    %v600 = vsel %vm584, %v599, %v578
    %s601 = scalar_lea.vmem [#allocation2], 30
    %v602 = vld [vmem:[%s601] ss:$0 sm:$0xff]
    %v603 = vxor.u32 %v602, 2147483648
    %v604 = vlaneseq
    %v605 = vand.u32 %v604, 127
    %vm606 = vcmp.eq.s32.totalorder %v605, 30
    %v607 = vmul.f32 %v603, %v588
    %608 = vadd.xlane.f32.xlu0 %v607
    %v609 = vpop.xlane.xlu0 %608
    %v610 = vsel %vm606, %v609, %v588
    %v611 = vmul.f32 %v603, %v592
    %612 = vadd.xlane.f32.xlu0 %v611
    %v613 = vpop.xlane.xlu0 %612
    %v614 = vsel %vm606, %v613, %v592
    %v615 = vmul.f32 %v603, %v596
    %616 = vadd.xlane.f32.xlu0 %v615
    %v617 = vpop.xlane.xlu0 %616
    %v618 = vsel %vm606, %v617, %v596
    %v619 = vmul.f32 %v603, %v600
    %620 = vadd.xlane.f32.xlu0 %v619
    %v621 = vpop.xlane.xlu0 %620
    %v622 = vsel %vm606, %v621, %v600
    %s623 = scalar_lea.vmem [#allocation2], 31
    %v624 = vld [vmem:[%s623] ss:$0 sm:$0xff]
    %v625 = vxor.u32 %v624, 2147483648
    %v626 = vlaneseq
    %v627 = vand.u32 %v626, 127
    %vm628 = vcmp.eq.s32.totalorder %v627, 31
    %v629 = vmul.f32 %v625, %v610
    %630 = vadd.xlane.f32.xlu0 %v629
    %v631 = vpop.xlane.xlu0 %630
    %v632 = vsel %vm628, %v631, %v610
    %v633 = vmul.f32 %v625, %v614
    %634 = vadd.xlane.f32.xlu0 %v633
    %v635 = vpop.xlane.xlu0 %634
    %v636 = vsel %vm628, %v635, %v614
    %v637 = vmul.f32 %v625, %v618
    %638 = vadd.xlane.f32.xlu0 %v637
    %v639 = vpop.xlane.xlu0 %638
    %v640 = vsel %vm628, %v639, %v618
    %v641 = vmul.f32 %v625, %v622
    %642 = vadd.xlane.f32.xlu0 %v641
    %v643 = vpop.xlane.xlu0 %642
    %v644 = vsel %vm628, %v643, %v622
    %v645 = vrcp.pop %v56
    %v646 = vmul.f32 %v632, %v645
    %vm647 = vweird.f32 %v56
    %v648 = vsel %vm647, %v632, %v646
    %649 = vst [vmem:[#allocation1] sm:$0xff] %v648
    %v650 = vrcp.pop %v72
    %v651 = vmul.f32 %v636, %v650
    %vm652 = vweird.f32 %v72
    %v653 = vsel %vm652, %v636, %v651
    %s654 = scalar_lea.vmem [#allocation1], 8
    %655 = vst [vmem:[%s654] sm:$0xff] %v653
    %v656 = vrcp.pop %v88
    %v657 = vmul.f32 %v640, %v656
    %vm658 = vweird.f32 %v88
    %v659 = vsel %vm658, %v640, %v657
    %s660 = scalar_lea.vmem [#allocation1], 16
    %661 = vst [vmem:[%s660] sm:$0xff] %v659
    %v662 = vrcp.pop %v104
    %v663 = vmul.f32 %v644, %v662
    %vm664 = vweird.f32 %v104
    %v665 = vsel %vm664, %v644, %v663
    %s666 = scalar_lea.vmem [#allocation1], 24
    %667 = vst [vmem:[%s666] sm:$0xff] %v665
    // Predicated region
    $region36: #{custom-call.10} parent=1 // pred_check
      _
    $region37: #{custom-call.10} parent=1 // pred_check_branch
      %669 = sbr.rel (0) target = $region39
    $region38: #{custom-call.10} parent=1 // pred_region
      // Predicated region
      $region40: #{custom-call.10} parent=38 // pred_check
        _
      $region41: #{custom-call.10} parent=38 // pred_check_branch
        %671 = sbr.rel (0) target = $region43
      $region42: #{custom-call.10} parent=38 // pred_region
        // Predicated region
        $region55: #{custom-call.10} parent=42 // pred_check
          _
        $region56: #{custom-call.10} parent=42 // pred_check_branch
          %692 = sbr.rel (0) target = $region58
        $region57: #{custom-call.10} parent=42 // pred_region
          loop: start=0, step=1, limit=1
          $region59: #{custom-call.10} parent=57 // loop_pre_header
            _
          $region60: #{custom-call.10} parent=57 // loop_header
            %s694 = sphi 0, %s698
            %p695 = scmp.ge.s32.totalorder %s694, 1
            %s699 = sphi [#allocation1], [#allocation1]
            %s700 = sphi %s1, %s1
          $region61: #{custom-call.10} parent=57 // loop_header_branch
            %697 = sbr.rel (%p695) target = $region65
          $region62: #{custom-call.10} parent=57 // loop_body
            %v701 = vld [vmem:[%s699] sm:$0xff]
            %702 = vst [vmem:[%s700] sm:$0xff] %v701
            %v703 = vld [vmem:[%s699 + $0x8] sm:$0xff]
            %704 = vst [vmem:[%s700 + $0x8] sm:$0xff] %v703
            %v705 = vld [vmem:[%s699 + $0x10] sm:$0xff]
            %706 = vst [vmem:[%s700 + $0x10] sm:$0xff] %v705
            %v707 = vld [vmem:[%s699 + $0x18] sm:$0xff]
            %708 = vst [vmem:[%s700 + $0x18] sm:$0xff] %v707
          $region63: #{custom-call.10} parent=57 // loop_footer
            %s698 = sadd.s32 1, %s694
          $region64: #{custom-call.10} parent=57 // loop_footer_branch
            %693 = sbr.rel target = $region60
          $region65: #{custom-call.10} parent=57 // loop_exit
            _
        $region58: #{custom-call.10} parent=42 // pred_fallthru
          _
        // Predicated region
        $region66: #{custom-call.10} parent=42 // pred_check
          _
        $region67: #{custom-call.10} parent=42 // pred_check_branch
          %710 = sbr.rel target = $region69
        $region68: #{custom-call.10} parent=42 // pred_region
          _
        $region69: #{custom-call.10} parent=42 // pred_fallthru
          _
      $region43: #{custom-call.10} parent=38 // pred_fallthru
        _
      // Predicated region
      $region44: #{custom-call.10} parent=38 // pred_check
        _
      $region45: #{custom-call.10} parent=38 // pred_check_branch
        %673 = sbr.rel target = $region47
      $region46: #{custom-call.10} parent=38 // pred_region
        loop: start=0, step=1, limit=1
        $region48: #{custom-call.10} parent=46 // loop_pre_header
          _
        $region49: #{custom-call.10} parent=46 // loop_header
          %s676 = sphi 0, %s680
          %p677 = scmp.ge.s32.totalorder %s676, 1
          %s681 = sphi [#allocation1], [#allocation1]
          %s682 = sphi %s1, %s1
        $region50: #{custom-call.10} parent=46 // loop_header_branch
          %679 = sbr.rel (%p677) target = $region54
        $region51: #{custom-call.10} parent=46 // loop_body
          %v683 = vld [vmem:[%s681] sm:$0xff]
          %684 = vst [vmem:[%s682] sm:$0xff] %v683
          %v685 = vld [vmem:[%s681 + $0x8] sm:$0xff]
          %686 = vst [vmem:[%s682 + $0x8] sm:$0xff] %v685
          %v687 = vld [vmem:[%s681 + $0x10] sm:$0xff]
          %688 = vst [vmem:[%s682 + $0x10] sm:$0xff] %v687
          %v689 = vld [vmem:[%s681 + $0x18] sm:$0xff]
          %690 = vst [vmem:[%s682 + $0x18] sm:$0xff] %v689
        $region52: #{custom-call.10} parent=46 // loop_footer
          %s680 = sadd.s32 1, %s676
        $region53: #{custom-call.10} parent=46 // loop_footer_branch
          %675 = sbr.rel target = $region49
        $region54: #{custom-call.10} parent=46 // loop_exit
          _
      $region47: #{custom-call.10} parent=38 // pred_fallthru
        _
    $region39: #{custom-call.10} parent=1 // pred_fallthru
      _
    %711 = vnop

// kernel: _koopman_forward.2
$region0: #{_koopman_forward.2}
  #allocation0 [shape = 'u32[]', space=smem, size = 0x4, offset = 0x4, fixed_abs, tag = 'smem constant byte address 0x4 - core index']
  #allocation1 [shape = 'u32[144,128]{1,0:T(1,128)}', space=vmem, size = 0x12000, scoped, tag = 'internal scratch']
  %s0 = inlined_call_operand.hbm [shape: f32[64,32], index: 0, kind: input, shape index: {}]
  %s1 = inlined_call_operand.vmem [shape: f32[32,64], index: 1, kind: output, shape index: {}]
  %s2 = sld [smem:[#allocation0]]
  $region18: #{_koopman_forward.2} parent=0
    _
  %s4 = ssub.s32 1, %s2
  %s5 = scalar_select 0, %s4, %s2
  $region1: #{_koopman_forward.2} parent=0
    #allocation2 [shape = 'u8[32768]{0}', space=vmem, size = 0x8000, scoped, tag = 'input window, operand 0, single buffered']
    #allocation3 [shape = 's32[1]{0}', space=sflag, size = 0x4, scoped, tag = 'scoped memory for _koopman_forward.2']
    %6 = vsyncpa [#allocation3], 0
    // Predicated region
    $region2: #{_koopman_forward.2} parent=1 // pred_check
      _
    $region3: #{_koopman_forward.2} parent=1 // pred_check_branch
      %8 = sbr.rel (0) target = $region5
    $region4: #{_koopman_forward.2} parent=1 // pred_region
      %s10 = ssub.s32 1024, 1024
      %11 = vsyncadd [#allocation3], %s10
      %s12 = sshll.u32 [#allocation2], 4
      %s13 = int_to_ptr.vmem [resolvable:$true] %s12
      %18 = dma.hbm_to_vmem [thread:$0]  %s0, 1024, %s13, [#allocation3], 128, 128, 8
    $region5: #{_koopman_forward.2} parent=1 // pred_fallthru
      _
    // Predicated region
    $region6: #{_koopman_forward.2} parent=1 // pred_check
      _
    $region7: #{_koopman_forward.2} parent=1 // pred_check_branch
      %20 = sbr.rel (0) target = $region9
    $region8: #{_koopman_forward.2} parent=1 // pred_region
      %21 = dma.done [#allocation3], 1024
    $region9: #{_koopman_forward.2} parent=1 // pred_fallthru
      _
    %v22 = vld [vmem:[#allocation2] sm:$0xff]
    %v23 = vld [vmem:[#allocation2 + $0x8] sm:$0xff]
    %v24 = vld [vmem:[#allocation2 + $0x10] sm:$0xff]
    %v25 = vld [vmem:[#allocation2 + $0x18] sm:$0xff]
    %v26 = vld [vmem:[#allocation2 + $0x20] sm:$0xff]
    %v27 = vld [vmem:[#allocation2 + $0x28] sm:$0xff]
    %v28 = vld [vmem:[#allocation2 + $0x30] sm:$0xff]
    %v29 = vld [vmem:[#allocation2 + $0x38] sm:$0xff]
    %v30 = vlaneseq
    %v31 = vshrl.u32 %v30, 7
    %v32 = vadd.s32 %v31, 8
    %v33 = vadd.s32 %v31, 16
    %v34 = vadd.s32 %v31, 24
    %v35 = vadd.s32 %v31, 32
    %v36 = vadd.s32 %v31, 40
    %v37 = vadd.s32 %v31, 48
    %v38 = vadd.s32 %v31, 56
    %vm39 = vcmp.lt.s32.totalorder %v31, 0
    %v40 = vsub.s32 0, %v31
    %v41 = vsel %vm39, %v40, %v31
    %v42 = vshrl.u32 %v41, 4
    %v43 = vand.u32 %v41, 15
    %v44 = vsub.s32 0, %v43
    %v45 = vsel %vm39, %v44, %v43
    %vm46 = vcmp.lt.s32.totalorder %v32, 0
    %v47 = vsub.s32 0, %v32
    %v48 = vsel %vm46, %v47, %v32
    %v49 = vshrl.u32 %v48, 4
    %v50 = vand.u32 %v48, 15
    %v51 = vsub.s32 0, %v50
    %v52 = vsel %vm46, %v51, %v50
    %vm53 = vcmp.lt.s32.totalorder %v33, 0
    %v54 = vsub.s32 0, %v33
    %v55 = vsel %vm53, %v54, %v33
    %v56 = vshrl.u32 %v55, 4
    %v57 = vand.u32 %v55, 15
    %v58 = vsub.s32 0, %v57
    %v59 = vsel %vm53, %v58, %v57
    %vm60 = vcmp.lt.s32.totalorder %v34, 0
    %v61 = vsub.s32 0, %v34
    %v62 = vsel %vm60, %v61, %v34
    %v63 = vshrl.u32 %v62, 4
    %v64 = vand.u32 %v62, 15
    %v65 = vsub.s32 0, %v64
    %v66 = vsel %vm60, %v65, %v64
    %vm67 = vcmp.lt.s32.totalorder %v35, 0
    %v68 = vsub.s32 0, %v35
    %v69 = vsel %vm67, %v68, %v35
    %v70 = vshrl.u32 %v69, 4
    %v71 = vand.u32 %v69, 15
    %v72 = vsub.s32 0, %v71
    %v73 = vsel %vm67, %v72, %v71
    %vm74 = vcmp.lt.s32.totalorder %v36, 0
    %v75 = vsub.s32 0, %v36
    %v76 = vsel %vm74, %v75, %v36
    %v77 = vshrl.u32 %v76, 4
    %v78 = vand.u32 %v76, 15
    %v79 = vsub.s32 0, %v78
    %v80 = vsel %vm74, %v79, %v78
    %vm81 = vcmp.lt.s32.totalorder %v37, 0
    %v82 = vsub.s32 0, %v37
    %v83 = vsel %vm81, %v82, %v37
    %v84 = vshrl.u32 %v83, 4
    %v85 = vand.u32 %v83, 15
    %v86 = vsub.s32 0, %v85
    %v87 = vsel %vm81, %v86, %v85
    %vm88 = vcmp.lt.s32.totalorder %v38, 0
    %v89 = vsub.s32 0, %v38
    %v90 = vsel %vm88, %v89, %v38
    %v91 = vshrl.u32 %v90, 4
    %v92 = vand.u32 %v90, 15
    %v93 = vsub.s32 0, %v92
    %v94 = vsel %vm88, %v93, %v92
    %vm95 = vcmp.ne.s32.totalorder %v45, 0
    %vm96 = vcmp.ne.s32.totalorder %v52, 0
    %vm97 = vcmp.ne.s32.totalorder %v59, 0
    %vm98 = vcmp.ne.s32.totalorder %v66, 0
    %vm99 = vcmp.ne.s32.totalorder %v73, 0
    %vm100 = vcmp.ne.s32.totalorder %v80, 0
    %vm101 = vcmp.ne.s32.totalorder %v87, 0
    %vm102 = vcmp.ne.s32.totalorder %v94, 0
    %vm103 = vcmp.lt.s32.totalorder %v45, 0
    %vm104 = vcmp.lt.s32.totalorder %v52, 0
    %vm105 = vcmp.lt.s32.totalorder %v59, 0
    %vm106 = vcmp.lt.s32.totalorder %v66, 0
    %vm107 = vcmp.lt.s32.totalorder %v73, 0
    %vm108 = vcmp.lt.s32.totalorder %v80, 0
    %vm109 = vcmp.lt.s32.totalorder %v87, 0
    %vm110 = vcmp.lt.s32.totalorder %v94, 0
    %vm111 = vmand %vm103, %vm95
    %vm112 = vmand %vm104, %vm96
    %vm113 = vmand %vm105, %vm97
    %vm114 = vmand %vm106, %vm98
    %vm115 = vmand %vm107, %vm99
    %vm116 = vmand %vm108, %vm100
    %vm117 = vmand %vm109, %vm101
    %vm118 = vmand %vm110, %vm102
    %v119 = vadd.s32 %v45, 16
    %v120 = vadd.s32 %v52, 16
    %v121 = vadd.s32 %v59, 16
    %v122 = vadd.s32 %v66, 16
    %v123 = vadd.s32 %v73, 16
    %v124 = vadd.s32 %v80, 16
    %v125 = vadd.s32 %v87, 16
    %v126 = vadd.s32 %v94, 16
    %v127 = vsel %vm111, %v119, %v45
    %v128 = vsel %vm112, %v120, %v52
    %v129 = vsel %vm113, %v121, %v59
    %v130 = vsel %vm114, %v122, %v66
    %v131 = vsel %vm115, %v123, %v73
    %v132 = vsel %vm116, %v124, %v80
    %v133 = vsel %vm117, %v125, %v87
    %v134 = vsel %vm118, %v126, %v94
    %vm135 = vcmp.ne.s32.totalorder %v127, 15
    %vm136 = vcmp.ne.s32.totalorder %v128, 15
    %vm137 = vcmp.ne.s32.totalorder %v129, 15
    %vm138 = vcmp.ne.s32.totalorder %v130, 15
    %vm139 = vcmp.ne.s32.totalorder %v131, 15
    %vm140 = vcmp.ne.s32.totalorder %v132, 15
    %vm141 = vcmp.ne.s32.totalorder %v133, 15
    %vm142 = vcmp.ne.s32.totalorder %v134, 15
    %v143 = vsel %vm135, 1, 0
    %v144 = vsel %vm136, 1, 0
    %v145 = vsel %vm137, 1, 0
    %v146 = vsel %vm138, 1, 0
    %v147 = vsel %vm139, 1, 0
    %v148 = vsel %vm140, 1, 0
    %v149 = vsel %vm141, 1, 0
    %v150 = vsel %vm142, 1, 0
    %v151 = vcvt.s32.f32 %v143
    %v152 = vcvt.s32.f32 %v144
    %v153 = vcvt.s32.f32 %v145
    %v154 = vcvt.s32.f32 %v146
    %v155 = vcvt.s32.f32 %v147
    %v156 = vcvt.s32.f32 %v148
    %v157 = vcvt.s32.f32 %v149
    %v158 = vcvt.s32.f32 %v150
    %v159 = vmul.f32 %v22, %v151
    %v160 = vmul.f32 %v23, %v152
    %v161 = vmul.f32 %v24, %v153
    %v162 = vmul.f32 %v25, %v154
    %v163 = vmul.f32 %v26, %v155
    %v164 = vmul.f32 %v27, %v156
    %v165 = vmul.f32 %v28, %v157
    %v166 = vmul.f32 %v29, %v158
    %v167 = vrot.slane %v22, 1
    %v168 = vrot.slane %v23, 1
    %v169 = vrot.slane %v24, 1
    %v170 = vrot.slane %v25, 1
    %v171 = vrot.slane %v26, 1
    %v172 = vrot.slane %v27, 1
    %v173 = vrot.slane %v28, 1
    %v174 = vrot.slane %v29, 1
    %vm175 = vcmp.lt.s32.totalorder %v31, 7
    %v176 = vsel %vm175, %v173, %v174
    %v177 = vsel %vm175, %v172, %v173
    %v178 = vsel %vm175, %v171, %v172
    %v179 = vsel %vm175, %v170, %v171
    %v180 = vsel %vm175, %v169, %v170
    %v181 = vsel %vm175, %v168, %v169
    %v182 = vsel %vm175, %v167, %v168
    %v183 = vsel %vm175, %v174, %v167
    %192 = vrot.lane.b32.xlu0 %v182, 32
    %v193 = vpop.permute.xlu0 %192
    %194 = vrot.lane.b32.xlu0 %v181, 32
    %v195 = vpop.permute.xlu0 %194
    %196 = vrot.lane.b32.xlu0 %v180, 32
    %v197 = vpop.permute.xlu0 %196
    %198 = vrot.lane.b32.xlu0 %v179, 32
    %v199 = vpop.permute.xlu0 %198
    %200 = vrot.lane.b32.xlu0 %v178, 32
    %v201 = vpop.permute.xlu0 %200
    %202 = vrot.lane.b32.xlu0 %v177, 32
    %v203 = vpop.permute.xlu0 %202
    %204 = vrot.lane.b32.xlu0 %v176, 32
    %v205 = vpop.permute.xlu0 %204
    %206 = vrot.lane.b32.xlu0 %v183, 32
    %v207 = vpop.permute.xlu0 %206
    %vm216 = vcmask 261120
    %v217 = vsel %vm216, %v22, %v193
    %v218 = vsel %vm216, %v23, %v195
    %v219 = vsel %vm216, %v24, %v197
    %v220 = vsel %vm216, %v25, %v199
    %v221 = vsel %vm216, %v26, %v201
    %v222 = vsel %vm216, %v27, %v203
    %v223 = vsel %vm216, %v28, %v205
    %v224 = vsel %vm216, %v29, %v207
    %225 = vxpose.xlu0.b32.start [1/16] %v159, 128
    %226 = vxpose.xlu0.b32.cont [2/16] %v160, 128
    %227 = vxpose.xlu0.b32.cont [3/16] %v161, 128
    %228 = vxpose.xlu0.b32.cont [4/16] %v162, 128
    %229 = vxpose.xlu0.b32.cont [5/16] %v163, 128
    %230 = vxpose.xlu0.b32.cont [6/16] %v164, 128
    %231 = vxpose.xlu0.b32.cont [7/16] %v165, 128
    %232 = vxpose.xlu0.b32.cont [8/16] %v166, 128
    %233 = vxpose.xlu0.b32.cont [9/16] 0.0, 128
    %234 = vxpose.xlu0.b32.cont [10/16] 0.0, 128
    %235 = vxpose.xlu0.b32.cont [11/16] 0.0, 128
    %236 = vxpose.xlu0.b32.cont [12/16] 0.0, 128
    %237 = vxpose.xlu0.b32.cont [13/16] 0.0, 128
    %238 = vxpose.xlu0.b32.cont [14/16] 0.0, 128
    %239 = vxpose.xlu0.b32.cont [15/16] 0.0, 128
    %240 = vxpose.xlu0.b32.end [16/16] 0.0, 128
    %v241 = vpop.trf.xlu0
    %v242 = vpop.trf.xlu0
    %v243 = vpop.trf.xlu0
    %v244 = vpop.trf.xlu0
    %v245 = vpop.trf.xlu0
    %v246 = vpop.trf.xlu0
    %v247 = vpop.trf.xlu0
    %v248 = vpop.trf.xlu0
    %v249 = vpop.trf.xlu0
    %v250 = vpop.trf.xlu0
    %v251 = vpop.trf.xlu0
    %v252 = vpop.trf.xlu0
    %v253 = vpop.trf.xlu0
    %v254 = vpop.trf.xlu0
    %v255 = vpop.trf.xlu0
    %v256 = vpop.trf.xlu0
    %vm257 = vcmask 523264
    %v259 = vsel %vm257, %v241, 0
    %v262 = vsel %vm257, %v242, 0
    %v265 = vsel %vm257, %v243, 0
    %v268 = vsel %vm257, %v244, 0
    %270 = vmatprep.subr.mxu0 0.0
    %271 = vmatpush1.msra.mxu0 %v217
    %272 = vmatprep.subr.mxu0 0.0
    %273 = vmatpush1.msra.mxu0 %v218
    %274 = vmatprep.subr.mxu0 0.0
    %275 = vmatpush1.msra.mxu0 %v219
    %276 = vmatprep.subr.mxu0 0.0
    %277 = vmatpush1.msra.mxu0 %v220
    %278 = vmatprep.subr.mxu0 0.0
    %279 = vmatpush1.msra.mxu0 %v221
    %280 = vmatprep.subr.mxu0 0.0
    %281 = vmatpush1.msra.mxu0 %v222
    %282 = vmatprep.subr.mxu0 0.0
    %283 = vmatpush1.msra.mxu0 %v223
    %284 = vmatprep.subr.mxu0 0.0
    %285 = vmatpush1.msra.mxu0 %v224
    %286 = vmatprep.subr.mxu0 0.0
    %287 = vmatpush1.msra.mxu0 0.0
    %288 = vmatprep.subr.mxu0 0.0
    %289 = vmatpush1.msra.mxu0 0.0
    %290 = vmatprep.subr.mxu0 0.0
    %291 = vmatpush1.msra.mxu0 0.0
    %292 = vmatprep.subr.mxu0 0.0
    %293 = vmatpush1.msra.mxu0 0.0
    %294 = vmatprep.subr.mxu0 0.0
    %295 = vmatpush1.msra.mxu0 0.0
    %296 = vmatprep.subr.mxu0 0.0
    %297 = vmatpush1.msra.mxu0 0.0
    %298 = vmatprep.subr.mxu0 0.0
    %299 = vmatpush1.msra.mxu0 0.0
    %300 = vmatprep.subr.mxu0 0.0
    %301 = vmatpush1.msra.mxu0 0.0
    %302 = vmatprep.subr.mxu0 0.0
    %303 = vmatpush1.msra.mxu0 0.0
    %304 = vmatprep.subr.mxu0 0.0
    %305 = vmatpush1.msra.mxu0 0.0
    %306 = vmatprep.subr.mxu0 0.0
    %307 = vmatpush1.msra.mxu0 0.0
    %308 = vmatprep.subr.mxu0 0.0
    %309 = vmatpush1.msra.mxu0 0.0
    %310 = vmatprep.subr.mxu0 0.0
    %311 = vmatpush1.msra.mxu0 0.0
    %312 = vmatprep.subr.mxu0 0.0
    %313 = vmatpush1.msra.mxu0 0.0
    %314 = vmatprep.subr.mxu0 0.0
    %315 = vmatpush1.msra.mxu0 0.0
    %316 = vmatprep.subr.mxu0 0.0
    %317 = vmatpush1.msra.mxu0 0.0
    %318 = vmatprep.subr.mxu0 0.0
    %319 = vmatpush1.msra.mxu0 0.0
    %320 = vmatprep.subr.mxu0 0.0
    %321 = vmatpush1.msra.mxu0 0.0
    %322 = vmatprep.subr.mxu0 0.0
    %323 = vmatpush1.msra.mxu0 0.0
    %324 = vmatprep.subr.mxu0 0.0
    %325 = vmatpush1.msra.mxu0 0.0
    %326 = vmatprep.subr.mxu0 0.0
    %327 = vmatpush1.msra.mxu0 0.0
    %328 = vmatprep.subr.mxu0 0.0
    %329 = vmatpush1.msra.mxu0 0.0
    %330 = vmatprep.subr.mxu0 0.0
    %331 = vmatpush1.msra.mxu0 0.0
    %332 = vmatprep.subr.mxu0 0.0
    %333 = vmatpush1.msra.mxu0 0.0
    %334 = vmatprep.mubr.f32.mxu0 0.0
    %335 = vmatmul.mubr.f32.gmra.mrb[0].mxu0 %v259
    %v336 = vpop.f32.mrb[0].mxu0
    %v337 = vadd.f32 0.0, %v336
    %v338 = vpop.f32.mrb[0].mxu0
    %339 = vmatprep.mubr.f32.mxu0 0.0
    %340 = vmatmul.mubr.f32.gmra.mrb[0].mxu0 %v262
    %v341 = vpop.f32.mrb[0].mxu0
    %v342 = vadd.f32 0.0, %v341
    %v343 = vpop.f32.mrb[0].mxu0
    %344 = vmatprep.mubr.f32.mxu0 0.0
    %345 = vmatmul.mubr.f32.gmra.mrb[0].mxu0 %v265
    %v346 = vpop.f32.mrb[0].mxu0
    %v347 = vadd.f32 0.0, %v346
    %v348 = vpop.f32.mrb[0].mxu0
    %349 = vmatprep.mubr.f32.mxu0 0.0
    %350 = vmatmul.mubr.f32.gmra.mrb[0].mxu0 %v268
    %v351 = vpop.f32.mrb[0].mxu0
    %v352 = vadd.f32 0.0, %v351
    %v353 = vpop.f32.mrb[0].mxu0
    %354 = vdwg.mxu0
    %355 = vst.msk [vmem:[%s1] sm:$0xff] %vm257, %v337
    %356 = vst.msk [vmem:[%s1 + $0x8] sm:$0xff] %vm257, %v342
    %357 = vst.msk [vmem:[%s1 + $0x10] sm:$0xff] %vm257, %v347
    %358 = vst.msk [vmem:[%s1 + $0x18] sm:$0xff] %vm257, %v352
    // Predicated region
    $region10: #{_koopman_forward.2} parent=1 // pred_check
      _
    $region11: #{_koopman_forward.2} parent=1 // pred_check_branch
      %360 = sbr.rel (0) target = $region13
    $region12: #{_koopman_forward.2} parent=1 // pred_region
      _
    $region13: #{_koopman_forward.2} parent=1 // pred_fallthru
      _
    // Predicated region
    $region14: #{_koopman_forward.2} parent=1 // pred_check
      _
    $region15: #{_koopman_forward.2} parent=1 // pred_check_branch
      %362 = sbr.rel (0) target = $region17
    $region16: #{_koopman_forward.2} parent=1 // pred_region
      _
    $region17: #{_koopman_forward.2} parent=1 // pred_fallthru
      _
    %363 = vsyncpa [#allocation3], 1

// kernel: _koopman_forward.3
$region0: #{_koopman_forward.3}
  #allocation0 [shape = 'u32[]', space=smem, size = 0x4, offset = 0x4, fixed_abs, tag = 'smem constant byte address 0x4 - core index']
  #allocation1 [shape = 'u32[144,128]{1,0:T(1,128)}', space=vmem, size = 0x12000, scoped, tag = 'internal scratch']
  %s0 = inlined_call_operand.vmem [shape: f32[64,32], index: 0, kind: input, shape index: {}]
  %s1 = inlined_call_operand.vmem [shape: f32[32,32], index: 1, kind: input, shape index: {}]
  %s2 = inlined_call_operand.vmem [shape: f32[64,32], index: 2, kind: output, shape index: {}]
  %s3 = sld [smem:[#allocation0]]
  $region18: #{_koopman_forward.3} parent=0
    _
  %s5 = ssub.s32 1, %s3
  %s6 = scalar_select 0, %s5, %s3
  // Predicated region
  $region2: #{_koopman_forward.3} parent=0 // pred_check
    _
  $region3: #{_koopman_forward.3} parent=0 // pred_check_branch
    %8 = sbr.rel (0) target = $region5
  $region4: #{_koopman_forward.3} parent=0 // pred_region
    _
  $region5: #{_koopman_forward.3} parent=0 // pred_fallthru
    _
  // Predicated region
  $region6: #{_koopman_forward.3} parent=0 // pred_check
    _
  $region7: #{_koopman_forward.3} parent=0 // pred_check_branch
    %10 = sbr.rel (0) target = $region9
  $region8: #{_koopman_forward.3} parent=0 // pred_region
    _
  $region9: #{_koopman_forward.3} parent=0 // pred_fallthru
    _
  %v11 = vld [vmem:[%s0] sm:$0xff]
  %v12 = vld [vmem:[%s0 + $0x8] sm:$0xff]
  %v13 = vld [vmem:[%s0 + $0x10] sm:$0xff]
  %v14 = vld [vmem:[%s0 + $0x18] sm:$0xff]
  %v15 = vld [vmem:[%s0 + $0x20] sm:$0xff]
  %v16 = vld [vmem:[%s0 + $0x28] sm:$0xff]
  %v17 = vld [vmem:[%s0 + $0x30] sm:$0xff]
  %v18 = vld [vmem:[%s0 + $0x38] sm:$0xff]
  %v19 = vld [vmem:[%s1] sm:$0xff]
  %v20 = vld [vmem:[%s1 + $0x8] sm:$0xff]
  %v21 = vld [vmem:[%s1 + $0x10] sm:$0xff]
  %v22 = vld [vmem:[%s1 + $0x18] sm:$0xff]
  %vm23 = vcmask 261120
  %v25 = vsel %vm23, %v11, 0
  %v28 = vsel %vm23, %v12, 0
  %v31 = vsel %vm23, %v13, 0
  %v34 = vsel %vm23, %v14, 0
  %v37 = vsel %vm23, %v15, 0
  %v40 = vsel %vm23, %v16, 0
  %v43 = vsel %vm23, %v17, 0
  %v46 = vsel %vm23, %v18, 0
  %48 = vmatprep.subr.mxu0 0.0
  %49 = vmatpush1.msra.mxu0 %v19
  %50 = vmatprep.subr.mxu0 0.0
  %51 = vmatpush1.msra.mxu0 %v20
  %52 = vmatprep.subr.mxu0 0.0
  %53 = vmatpush1.msra.mxu0 %v21
  %54 = vmatprep.subr.mxu0 0.0
  %55 = vmatpush1.msra.mxu0 %v22
  %56 = vmatprep.subr.mxu0 0.0
  %57 = vmatpush1.msra.mxu0 0.0
  %58 = vmatprep.subr.mxu0 0.0
  %59 = vmatpush1.msra.mxu0 0.0
  %60 = vmatprep.subr.mxu0 0.0
  %61 = vmatpush1.msra.mxu0 0.0
  %62 = vmatprep.subr.mxu0 0.0
  %63 = vmatpush1.msra.mxu0 0.0
  %64 = vmatprep.subr.mxu0 0.0
  %65 = vmatpush1.msra.mxu0 0.0
  %66 = vmatprep.subr.mxu0 0.0
  %67 = vmatpush1.msra.mxu0 0.0
  %68 = vmatprep.subr.mxu0 0.0
  %69 = vmatpush1.msra.mxu0 0.0
  %70 = vmatprep.subr.mxu0 0.0
  %71 = vmatpush1.msra.mxu0 0.0
  %72 = vmatprep.subr.mxu0 0.0
  %73 = vmatpush1.msra.mxu0 0.0
  %74 = vmatprep.subr.mxu0 0.0
  %75 = vmatpush1.msra.mxu0 0.0
  %76 = vmatprep.subr.mxu0 0.0
  %77 = vmatpush1.msra.mxu0 0.0
  %78 = vmatprep.subr.mxu0 0.0
  %79 = vmatpush1.msra.mxu0 0.0
  %80 = vmatprep.subr.mxu0 0.0
  %81 = vmatpush1.msra.mxu0 0.0
  %82 = vmatprep.subr.mxu0 0.0
  %83 = vmatpush1.msra.mxu0 0.0
  %84 = vmatprep.subr.mxu0 0.0
  %85 = vmatpush1.msra.mxu0 0.0
  %86 = vmatprep.subr.mxu0 0.0
  %87 = vmatpush1.msra.mxu0 0.0
  %88 = vmatprep.subr.mxu0 0.0
  %89 = vmatpush1.msra.mxu0 0.0
  %90 = vmatprep.subr.mxu0 0.0
  %91 = vmatpush1.msra.mxu0 0.0
  %92 = vmatprep.subr.mxu0 0.0
  %93 = vmatpush1.msra.mxu0 0.0
  %94 = vmatprep.subr.mxu0 0.0
  %95 = vmatpush1.msra.mxu0 0.0
  %96 = vmatprep.subr.mxu0 0.0
  %97 = vmatpush1.msra.mxu0 0.0
  %98 = vmatprep.subr.mxu0 0.0
  %99 = vmatpush1.msra.mxu0 0.0
  %100 = vmatprep.subr.mxu0 0.0
  %101 = vmatpush1.msra.mxu0 0.0
  %102 = vmatprep.subr.mxu0 0.0
  %103 = vmatpush1.msra.mxu0 0.0
  %104 = vmatprep.subr.mxu0 0.0
  %105 = vmatpush1.msra.mxu0 0.0
  %106 = vmatprep.subr.mxu0 0.0
  %107 = vmatpush1.msra.mxu0 0.0
  %108 = vmatprep.subr.mxu0 0.0
  %109 = vmatpush1.msra.mxu0 0.0
  %110 = vmatprep.subr.mxu0 0.0
  %111 = vmatpush1.msra.mxu0 0.0
  %112 = vmatprep.mubr.f32.mxu0 0.0
  %113 = vmatmul.mubr.f32.gmra.mrb[0].mxu0 %v25
  %v114 = vpop.f32.mrb[0].mxu0
  %v115 = vadd.f32 0.0, %v114
  %v116 = vpop.f32.mrb[0].mxu0
  %117 = vmatprep.mubr.f32.mxu0 0.0
  %118 = vmatmul.mubr.f32.gmra.mrb[0].mxu0 %v28
  %v119 = vpop.f32.mrb[0].mxu0
  %v120 = vadd.f32 0.0, %v119
  %v121 = vpop.f32.mrb[0].mxu0
  %122 = vmatprep.mubr.f32.mxu0 0.0
  %123 = vmatmul.mubr.f32.gmra.mrb[0].mxu0 %v31
  %v124 = vpop.f32.mrb[0].mxu0
  %v125 = vadd.f32 0.0, %v124
  %v126 = vpop.f32.mrb[0].mxu0
  %127 = vmatprep.mubr.f32.mxu0 0.0
  %128 = vmatmul.mubr.f32.gmra.mrb[0].mxu0 %v34
  %v129 = vpop.f32.mrb[0].mxu0
  %v130 = vadd.f32 0.0, %v129
  %v131 = vpop.f32.mrb[0].mxu0
  %132 = vmatprep.mubr.f32.mxu0 0.0
  %133 = vmatmul.mubr.f32.gmra.mrb[0].mxu0 %v37
  %v134 = vpop.f32.mrb[0].mxu0
  %v135 = vadd.f32 0.0, %v134
  %v136 = vpop.f32.mrb[0].mxu0
  %137 = vmatprep.mubr.f32.mxu0 0.0
  %138 = vmatmul.mubr.f32.gmra.mrb[0].mxu0 %v40
  %v139 = vpop.f32.mrb[0].mxu0
  %v140 = vadd.f32 0.0, %v139
  %v141 = vpop.f32.mrb[0].mxu0
  %142 = vmatprep.mubr.f32.mxu0 0.0
  %143 = vmatmul.mubr.f32.gmra.mrb[0].mxu0 %v43
  %v144 = vpop.f32.mrb[0].mxu0
  %v145 = vadd.f32 0.0, %v144
  %v146 = vpop.f32.mrb[0].mxu0
  %147 = vmatprep.mubr.f32.mxu0 0.0
  %148 = vmatmul.mubr.f32.gmra.mrb[0].mxu0 %v46
  %v149 = vpop.f32.mrb[0].mxu0
  %v150 = vadd.f32 0.0, %v149
  %v151 = vpop.f32.mrb[0].mxu0
  %152 = vdwg.mxu0
  %v153 = vrot.slane %v115, 7
  %v154 = vrot.slane %v120, 7
  %v155 = vrot.slane %v125, 7
  %v156 = vrot.slane %v130, 7
  %v157 = vrot.slane %v135, 7
  %v158 = vrot.slane %v140, 7
  %v159 = vrot.slane %v145, 7
  %v160 = vrot.slane %v150, 7
  %v161 = vlaneseq
  %v162 = vshrl.u32 %v161, 7
  %vm163 = vcmp.lt.s32.totalorder %v162, 1
  %v164 = vsel %vm163, %v159, %v160
  %v165 = vsel %vm163, %v158, %v159
  %v166 = vsel %vm163, %v157, %v158
  %v167 = vsel %vm163, %v156, %v157
  %v168 = vsel %vm163, %v155, %v156
  %v169 = vsel %vm163, %v154, %v155
  %v170 = vsel %vm163, %v153, %v154
  %v171 = vsel %vm163, %v160, %v153
  %v172 = vadd.s32 %v162, 8
  %v173 = vadd.s32 %v162, 16
  %v174 = vadd.s32 %v162, 24
  %v175 = vadd.s32 %v162, 32
  %v176 = vadd.s32 %v162, 40
  %v177 = vadd.s32 %v162, 48
  %v178 = vadd.s32 %v162, 56
  %vm179 = vcmp.lt.s32.totalorder %v162, 0
  %v180 = vsub.s32 0, %v162
  %v181 = vsel %vm179, %v180, %v162
  %v182 = vshrl.u32 %v181, 4
  %v183 = vand.u32 %v181, 15
  %v184 = vsub.s32 0, %v183
  %v185 = vsel %vm179, %v184, %v183
  %vm186 = vcmp.lt.s32.totalorder %v172, 0
  %v187 = vsub.s32 0, %v172
  %v188 = vsel %vm186, %v187, %v172
  %v189 = vshrl.u32 %v188, 4
  %v190 = vand.u32 %v188, 15
  %v191 = vsub.s32 0, %v190
  %v192 = vsel %vm186, %v191, %v190
  %vm193 = vcmp.lt.s32.totalorder %v173, 0
  %v194 = vsub.s32 0, %v173
  %v195 = vsel %vm193, %v194, %v173
  %v196 = vshrl.u32 %v195, 4
  %v197 = vand.u32 %v195, 15
  %v198 = vsub.s32 0, %v197
  %v199 = vsel %vm193, %v198, %v197
  %vm200 = vcmp.lt.s32.totalorder %v174, 0
  %v201 = vsub.s32 0, %v174
  %v202 = vsel %vm200, %v201, %v174
  %v203 = vshrl.u32 %v202, 4
  %v204 = vand.u32 %v202, 15
  %v205 = vsub.s32 0, %v204
  %v206 = vsel %vm200, %v205, %v204
  %vm207 = vcmp.lt.s32.totalorder %v175, 0
  %v208 = vsub.s32 0, %v175
  %v209 = vsel %vm207, %v208, %v175
  %v210 = vshrl.u32 %v209, 4
  %v211 = vand.u32 %v209, 15
  %v212 = vsub.s32 0, %v211
  %v213 = vsel %vm207, %v212, %v211
  %vm214 = vcmp.lt.s32.totalorder %v176, 0
  %v215 = vsub.s32 0, %v176
  %v216 = vsel %vm214, %v215, %v176
  %v217 = vshrl.u32 %v216, 4
  %v218 = vand.u32 %v216, 15
  %v219 = vsub.s32 0, %v218
  %v220 = vsel %vm214, %v219, %v218
  %vm221 = vcmp.lt.s32.totalorder %v177, 0
  %v222 = vsub.s32 0, %v177
  %v223 = vsel %vm221, %v222, %v177
  %v224 = vshrl.u32 %v223, 4
  %v225 = vand.u32 %v223, 15
  %v226 = vsub.s32 0, %v225
  %v227 = vsel %vm221, %v226, %v225
  %vm228 = vcmp.lt.s32.totalorder %v178, 0
  %v229 = vsub.s32 0, %v178
  %v230 = vsel %vm228, %v229, %v178
  %v231 = vshrl.u32 %v230, 4
  %v232 = vand.u32 %v230, 15
  %v233 = vsub.s32 0, %v232
  %v234 = vsel %vm228, %v233, %v232
  %vm235 = vcmp.ne.s32.totalorder %v185, 0
  %vm236 = vcmp.ne.s32.totalorder %v192, 0
  %vm237 = vcmp.ne.s32.totalorder %v199, 0
  %vm238 = vcmp.ne.s32.totalorder %v206, 0
  %vm239 = vcmp.ne.s32.totalorder %v213, 0
  %vm240 = vcmp.ne.s32.totalorder %v220, 0
  %vm241 = vcmp.ne.s32.totalorder %v227, 0
  %vm242 = vcmp.ne.s32.totalorder %v234, 0
  %vm243 = vcmp.lt.s32.totalorder %v185, 0
  %vm244 = vcmp.lt.s32.totalorder %v192, 0
  %vm245 = vcmp.lt.s32.totalorder %v199, 0
  %vm246 = vcmp.lt.s32.totalorder %v206, 0
  %vm247 = vcmp.lt.s32.totalorder %v213, 0
  %vm248 = vcmp.lt.s32.totalorder %v220, 0
  %vm249 = vcmp.lt.s32.totalorder %v227, 0
  %vm250 = vcmp.lt.s32.totalorder %v234, 0
  %vm251 = vmand %vm243, %vm235
  %vm252 = vmand %vm244, %vm236
  %vm253 = vmand %vm245, %vm237
  %vm254 = vmand %vm246, %vm238
  %vm255 = vmand %vm247, %vm239
  %vm256 = vmand %vm248, %vm240
  %vm257 = vmand %vm249, %vm241
  %vm258 = vmand %vm250, %vm242
  %v259 = vadd.s32 %v185, 16
  %v260 = vadd.s32 %v192, 16
  %v261 = vadd.s32 %v199, 16
  %v262 = vadd.s32 %v206, 16
  %v263 = vadd.s32 %v213, 16
  %v264 = vadd.s32 %v220, 16
  %v265 = vadd.s32 %v227, 16
  %v266 = vadd.s32 %v234, 16
  %v267 = vsel %vm251, %v259, %v185
  %v268 = vsel %vm252, %v260, %v192
  %v269 = vsel %vm253, %v261, %v199
  %v270 = vsel %vm254, %v262, %v206
  %v271 = vsel %vm255, %v263, %v213
  %v272 = vsel %vm256, %v264, %v220
  %v273 = vsel %vm257, %v265, %v227
  %v274 = vsel %vm258, %v266, %v234
  %vm275 = vcmp.eq.s32.totalorder %v267, 0
  %vm276 = vcmp.eq.s32.totalorder %v268, 0
  %vm277 = vcmp.eq.s32.totalorder %v269, 0
  %vm278 = vcmp.eq.s32.totalorder %v270, 0
  %vm279 = vcmp.eq.s32.totalorder %v271, 0
  %vm280 = vcmp.eq.s32.totalorder %v272, 0
  %vm281 = vcmp.eq.s32.totalorder %v273, 0
  %vm282 = vcmp.eq.s32.totalorder %v274, 0
  %v283 = vsel %vm275, %v11, %v171
  %v284 = vsel %vm276, %v12, %v170
  %v285 = vsel %vm277, %v13, %v169
  %v286 = vsel %vm278, %v14, %v168
  %v287 = vsel %vm279, %v15, %v167
  %v288 = vsel %vm280, %v16, %v166
  %v289 = vsel %vm281, %v17, %v165
  %v290 = vsel %vm282, %v18, %v164
  %291 = vst.msk [vmem:[%s2] sm:$0xff] %vm23, %v283
  %292 = vst.msk [vmem:[%s2 + $0x8] sm:$0xff] %vm23, %v284
  %293 = vst.msk [vmem:[%s2 + $0x10] sm:$0xff] %vm23, %v285
  %294 = vst.msk [vmem:[%s2 + $0x18] sm:$0xff] %vm23, %v286
  %295 = vst.msk [vmem:[%s2 + $0x20] sm:$0xff] %vm23, %v287
  %296 = vst.msk [vmem:[%s2 + $0x28] sm:$0xff] %vm23, %v288
  %297 = vst.msk [vmem:[%s2 + $0x30] sm:$0xff] %vm23, %v289
  %298 = vst.msk [vmem:[%s2 + $0x38] sm:$0xff] %vm23, %v290
  // Predicated region
  $region10: #{_koopman_forward.3} parent=0 // pred_check
    _
  $region11: #{_koopman_forward.3} parent=0 // pred_check_branch
    %300 = sbr.rel (0) target = $region13
  $region12: #{_koopman_forward.3} parent=0 // pred_region
    _
  $region13: #{_koopman_forward.3} parent=0 // pred_fallthru
    _
  // Predicated region
  $region14: #{_koopman_forward.3} parent=0 // pred_check
    _
  $region15: #{_koopman_forward.3} parent=0 // pred_check_branch
    %302 = sbr.rel (0) target = $region17
  $region16: #{_koopman_forward.3} parent=0 // pred_region
    _
  $region17: #{_koopman_forward.3} parent=0 // pred_fallthru
    _

</llo_original>
